<compile_context>
chip_gen: v7x
topology: tpu7x:2x2x1
jax: 0.10.0
libtpu: 0.0.40
codegen_flags: <defaults>
</compile_context>

<pallas_src>
import functools

import jax
import jax.numpy as jnp
from jax.experimental import pallas as pl
from jax.experimental.pallas import tpu as pltpu

EPS = 1e-12           # torch.nn.functional.normalize default eps
SLAB_ROWS = 32        # packed parameter slab rows
SLAB_COLS = 40        # packed parameter slab cols (f32, pads to one (32,128) VMEM tile)
_HI = jax.lax.Precision.HIGHEST


def backbone_kernel(x_ref, w_ref, o_ref):
    # x_ref: (2, tm) -- batch samples on lanes, the 2 input features on sublanes.
    # w_ref: (32, 40) packed parameter slab, VMEM-resident (constant index map).
    # o_ref: (2, tm) -- lane-dense output block, single full-width store.
    x = x_ref[...]                              # (2, tm)

    w2 = w_ref[0:30, 0:30]                      # (30, 30) layer-2 weight (out, in)
    w1 = w_ref[0:30, 30:32]                     # (30, 2)  layer-1 weight (out, in)
    b1 = w_ref[0:30, 32:33]                     # (30, 1)  layer-1 bias
    b2 = w_ref[0:30, 33:34]                     # (30, 1)  layer-2 bias
    w3 = w_ref[30:32, 0:30]                     # (2, 30)  layer-3 weight (out, in)
    b3 = w_ref[30:32, 34:35]                    # (2, 1)   layer-3 bias

    # Layer 1: Linear(2, 30) + ReLU.  K=2 matmul on the (otherwise idle) MXU.
    h = jnp.dot(w1, x, precision=_HI, preferred_element_type=jnp.float32) + b1   # (30, tm)
    h = jnp.maximum(h, 0.0)

    # Layer 2: Linear(30, 30) + ReLU.  MXU, pinned f32 precision.
    h = jnp.dot(w2, h, precision=_HI, preferred_element_type=jnp.float32) + b2   # (30, tm)
    h = jnp.maximum(h, 0.0)

    # Layer 3: Linear(30, 2).  M=2 matmul on the MXU (no (30, tm) VPU temps / XLU reduce).
    y = jnp.dot(w3, h, precision=_HI, preferred_element_type=jnp.float32) + b3   # (2, tm)

    # F.normalize(dim=1): y / max(||y||, eps) == y * rsqrt(max(||y||^2, eps^2)).
    sq = y[0:1, :] * y[0:1, :] + y[1:2, :] * y[1:2, :]                            # (1, tm)
    o_ref[...] = y * jax.lax.rsqrt(jnp.maximum(sq, EPS * EPS))                    # one store


def pack_params(params):
    """Pack all six weight/bias arrays into one (32, 40) f32 slab."""
    w1, b1 = params["w1"], params["b1"]     # (30, 2), (30,)
    w2, b2 = params["w2"], params["b2"]     # (30, 30), (30,)
    w3, b3 = params["w3"], params["b3"]     # (2, 30), (2,)
    slab = jnp.zeros((SLAB_ROWS, SLAB_COLS), jnp.float32)
    slab = slab.at[0:30, 0:30].set(w2.astype(jnp.float32))
    slab = slab.at[0:30, 30:32].set(w1.astype(jnp.float32))
    slab = slab.at[0:30, 32].set(b1.astype(jnp.float32))
    slab = slab.at[0:30, 33].set(b2.astype(jnp.float32))
    slab = slab.at[30:32, 0:30].set(w3.astype(jnp.float32))
    slab = slab.at[30:32, 34].set(b3.astype(jnp.float32))
    return slab


def _pick_tile(n, tm):
    """Lane tile: multiple of 128, capped for VMEM, >=2 grid steps when batch allows."""
    tm = max(128, (int(tm) // 128) * 128)
    tm = min(tm, 16384)                     # keep (30, tm) f32 intermediates a few MiB (v7x VMEM)
    if n > 128:
        # Guarantee at least 2 grid steps so the "parallel" axis can be split across
        # v7x's two TensorCores (no effect on v5e/v6e, 1 TC/chip).
        tm = min(tm, pl.cdiv(n, 2 * 128) * 128)
    else:
        tm = 128
    return tm


@functools.partial(jax.jit, static_argnames=("tm",))
def backbone_forward_t(x_t, params, *, tm=8192):
    """Lane-major entry point: x_t is (2, N) float32, returns (2, N) float32.

    No transposes — only a lane zero-pad to a multiple of the tile and a final slice.
    Padded columns are computed harmlessly (norm clamped by eps) and sliced off.
    """
    f, n = x_t.shape
    assert f == 2, "Backbone expects 2 input features"

    tile = _pick_tile(n, tm)
    n_pad = pl.cdiv(n, tile) * tile
    x_p = jnp.pad(x_t.astype(jnp.float32), ((0, 0), (0, n_pad - n)))
    slab = pack_params(params)

    out_t = pl.pallas_call(
        backbone_kernel,
        out_shape=jax.ShapeDtypeStruct((2, n_pad), jnp.float32),
        grid_spec=pltpu.PrefetchScalarGridSpec(
            num_scalar_prefetch=0,
            grid=(n_pad // tile,),
            in_specs=[
                pl.BlockSpec((2, tile), lambda i: (0, i)),                 # lane-dense x tile
                pl.BlockSpec((SLAB_ROWS, SLAB_COLS), lambda i: (0, 0)),    # resident weight slab
            ],
            out_specs=pl.BlockSpec((2, tile), lambda i: (0, i)),           # lane-dense output
        ),
        compiler_params=pltpu.CompilerParams(dimension_semantics=("parallel",)),
    )(x_p, slab)

    return out_t[:, :n]


@functools.partial(jax.jit, static_argnames=("tm",))
def backbone_forward(x, params, *, tm=8192):
    """PyTorch-interface wrapper: x is (N, 2) float32, returns (N, 2) float32."""
    n, f = x.shape
    assert f == 2, "Backbone expects 2 input features"
    # (N,2)<->(2,N) layout plumbing only; prefer backbone_forward_t if the caller can
    # keep the lane-major layout and skip these extra HBM passes.
    out_t = backbone_forward_t(jnp.transpose(x), params, tm=tm)
    return jnp.transpose(out_t)


def init_params(key):
    """Deterministic PyTorch-Linear-style init: U(-1/sqrt(fan_in), 1/sqrt(fan_in))."""
    def linear(k, fan_in, fan_out):
        kw, kb = jax.random.split(k)
        bound = 1.0 / jnp.sqrt(jnp.float32(fan_in))
        w = jax.random.uniform(kw, (fan_out, fan_in), jnp.float32, -bound, bound)
        b = jax.random.uniform(kb, (fan_out,), jnp.float32, -bound, bound)
        return w, b

    k1, k2, k3 = jax.random.split(key, 3)
    w1, b1 = linear(k1, 2, 30)
    w2, b2 = linear(k2, 30, 30)
    w3, b3 = linear(k3, 30, 2)
    return {"w1": w1, "b1": b1, "w2": w2, "b2": b2, "w3": w3, "b3": b3}


def reference_forward(x, params):
    """Pure-JAX reference with full-f32 matmuls (matches torch Backbone semantics)."""
    hp = jax.lax.Precision.HIGHEST
    h = jnp.maximum(jnp.dot(x, params["w1"].T, precision=hp) + params["b1"], 0.0)
    h = jnp.maximum(jnp.dot(h, params["w2"].T, precision=hp) + params["b2"], 0.0)
    y = jnp.dot(h, params["w3"].T, precision=hp) + params["b3"]
    norm = jnp.sqrt(jnp.sum(y * y, axis=1, keepdims=True))
    return y / jnp.maximum(norm, EPS)


if __name__ == "__main__":
    key = jax.random.PRNGKey(0)
    k_params, k_x = jax.random.split(key)
    params = init_params(k_params)

    # Small, ragged batch: exercises tail padding and multi-tile grids.
    x = jax.random.normal(k_x, (300, 2), jnp.float32)
    ref = reference_forward(x, params)

    # Explicit small tile: 3 grid steps (128-lane tiles) + tail padding.
    out = jax.block_until_ready(backbone_forward(x, params, tm=128))
    assert out.shape == (300, 2) and out.dtype == jnp.float32
    assert jnp.allclose(out, ref, atol=5e-5, rtol=5e-5), "mismatch vs JAX reference (tm=128)"

    # Default tile: clamp yields >=2 grid steps (v7x two-TensorCore split) over the padded batch.
    out2 = jax.block_until_ready(backbone_forward(x, params))
    assert jnp.allclose(out2, ref, atol=5e-5, rtol=5e-5), "mismatch vs JAX reference (default tm)"

    # Lane-major core path: no wrapper-side transposes at all.
    out_t = jax.block_until_ready(backbone_forward_t(jnp.transpose(x), params))
    assert out_t.shape == (2, 300)
    assert jnp.allclose(jnp.transpose(out_t), ref, atol=5e-5, rtol=5e-5), \
        "mismatch vs JAX reference (lane-major path)"

    print("KERNEL_OK")
</pallas_src>

<mosaic_0001>
module attributes {stable_mosaic.version = 11 : i64} {
  func.func @backbone_kernel(%arg0: i32, %arg1: memref<2x128xf32, #tpu.memory_space<vmem>>, %arg2: memref<32x40xf32, #tpu.memory_space<vmem>>, %arg3: memref<2x128xf32, #tpu.memory_space<vmem>>) attributes {dimension_semantics = [#tpu.dimension_semantics<parallel>], iteration_bounds = array<i64: 3>, scalar_prefetch = 0 : i64, scratch_operands = 0 : i64, tpu.core_type = #tpu.core_type<tc>, window_params = [{transform_indices = @transform_0, window_bounds = array<i64: 2, 128>}, {pipeline_mode = #tpu.pipeline_mode<synchronous>, transform_indices = @transform_1, window_bounds = array<i64: 32, 40>}, {transform_indices = @transform_2, window_bounds = array<i64: 2, 128>}]} {
    %c0 = arith.constant 0 : index
    %c0_0 = arith.constant 0 : index
    %0 = vector.load %arg1[%c0, %c0_0] : memref<2x128xf32, #tpu.memory_space<vmem>>, vector<2x128xf32>
    %c0_1 = arith.constant 0 : index
    %c0_2 = arith.constant 0 : index
    %1 = vector.load %arg2[%c0_1, %c0_2] : memref<32x40xf32, #tpu.memory_space<vmem>>, vector<30x30xf32>
    %c0_3 = arith.constant 0 : index
    %c30 = arith.constant 30 : index
    %2 = vector.load %arg2[%c0_3, %c30] : memref<32x40xf32, #tpu.memory_space<vmem>>, vector<30x2xf32>
    %c0_4 = arith.constant 0 : index
    %c32 = arith.constant 32 : index
    %3 = vector.load %arg2[%c0_4, %c32] : memref<32x40xf32, #tpu.memory_space<vmem>>, vector<30x1xf32>
    %c0_5 = arith.constant 0 : index
    %c33 = arith.constant 33 : index
    %4 = vector.load %arg2[%c0_5, %c33] : memref<32x40xf32, #tpu.memory_space<vmem>>, vector<30x1xf32>
    %c30_6 = arith.constant 30 : index
    %c0_7 = arith.constant 0 : index
    %5 = vector.load %arg2[%c30_6, %c0_7] : memref<32x40xf32, #tpu.memory_space<vmem>>, vector<2x30xf32>
    %c30_8 = arith.constant 30 : index
    %c34 = arith.constant 34 : index
    %6 = vector.load %arg2[%c30_8, %c34] : memref<32x40xf32, #tpu.memory_space<vmem>>, vector<2x1xf32>
    %cst = arith.constant dense<0.000000e+00> : vector<30x128xf32>
    %7 = tpu.matmul %2, %0, %cst {dimension_numbers = #tpu.dot_dimension_numbers<[1], [0], [0], [1], [0, 0, 1, 1], [], []>, precision = #tpu.contract_precision<fp32>} : vector<30x2xf32>, vector<2x128xf32>, vector<30x128xf32> -> vector<30x128xf32>
    %8 = vector.broadcast %3 : vector<30x1xf32> to vector<30x128xf32>
    %9 = arith.addf %7, %8 : vector<30x128xf32>
    %cst_9 = arith.constant 0.000000e+00 : f32
    %10 = vector.broadcast %cst_9 : f32 to vector<30x128xf32>
    %11 = arith.maximumf %9, %10 : vector<30x128xf32>
    %cst_10 = arith.constant dense<0.000000e+00> : vector<30x128xf32>
    %12 = tpu.matmul %1, %11, %cst_10 {dimension_numbers = #tpu.dot_dimension_numbers<[1], [0], [0], [1], [0, 0, 1, 1], [], []>, precision = #tpu.contract_precision<fp32>} : vector<30x30xf32>, vector<30x128xf32>, vector<30x128xf32> -> vector<30x128xf32>
    %13 = vector.broadcast %4 : vector<30x1xf32> to vector<30x128xf32>
    %14 = arith.addf %12, %13 : vector<30x128xf32>
    %cst_11 = arith.constant 0.000000e+00 : f32
    %15 = vector.broadcast %cst_11 : f32 to vector<30x128xf32>
    %16 = arith.maximumf %14, %15 : vector<30x128xf32>
    %cst_12 = arith.constant dense<0.000000e+00> : vector<2x128xf32>
    %17 = tpu.matmul %5, %16, %cst_12 {dimension_numbers = #tpu.dot_dimension_numbers<[1], [0], [0], [1], [0, 0, 1, 1], [], []>, precision = #tpu.contract_precision<fp32>} : vector<2x30xf32>, vector<30x128xf32>, vector<2x128xf32> -> vector<2x128xf32>
    %18 = vector.broadcast %6 : vector<2x1xf32> to vector<2x128xf32>
    %19 = arith.addf %17, %18 : vector<2x128xf32>
    %20 = vector.extract_strided_slice %19 {offsets = [0, 0], sizes = [1, 128], strides = [1, 1]} : vector<2x128xf32> to vector<1x128xf32>
    %21 = vector.extract_strided_slice %19 {offsets = [0, 0], sizes = [1, 128], strides = [1, 1]} : vector<2x128xf32> to vector<1x128xf32>
    %22 = arith.mulf %20, %21 : vector<1x128xf32>
    %23 = vector.extract_strided_slice %19 {offsets = [1, 0], sizes = [1, 128], strides = [1, 1]} : vector<2x128xf32> to vector<1x128xf32>
    %24 = vector.extract_strided_slice %19 {offsets = [1, 0], sizes = [1, 128], strides = [1, 1]} : vector<2x128xf32> to vector<1x128xf32>
    %25 = arith.mulf %23, %24 : vector<1x128xf32>
    %26 = arith.addf %22, %25 : vector<1x128xf32>
    %cst_13 = arith.constant 1.000000e-24 : f32
    %27 = vector.broadcast %cst_13 : f32 to vector<1x128xf32>
    %28 = arith.maximumf %26, %27 : vector<1x128xf32>
    %29 = math.rsqrt %28 : vector<1x128xf32>
    %30 = vector.broadcast %29 : vector<1x128xf32> to vector<2x128xf32>
    %31 = arith.mulf %19, %30 : vector<2x128xf32>
    %c0_14 = arith.constant 0 : index
    %c0_15 = arith.constant 0 : index
    %32 = vector.load %arg3[%c0_14, %c0_15] : memref<2x128xf32, #tpu.memory_space<vmem>>, vector<2x128xf32>
    tpu.vector_store %arg3[%c0_14, %c0_15], %31 {strides = array<i32>} : memref<2x128xf32, #tpu.memory_space<vmem>>, vector<2x128xf32>,
    return
  }
  func.func @transform_0(%arg0: i32) -> (i32, i32) {
    %c0_i32 = arith.constant 0 : i32
    %c0_i32_0 = arith.constant 0 : i32
    return %c0_i32, %arg0 : i32, i32
  }
  func.func @transform_1(%arg0: i32) -> (i32, i32) {
    %c0_i32 = arith.constant 0 : i32
    %c0_i32_0 = arith.constant 0 : i32
    %c0_i32_1 = arith.constant 0 : i32
    return %c0_i32, %c0_i32_0 : i32, i32
  }
  func.func @transform_2(%arg0: i32) -> (i32, i32) {
    %c0_i32 = arith.constant 0 : i32
    %c0_i32_0 = arith.constant 0 : i32
    return %c0_i32, %arg0 : i32, i32
  }
}

</mosaic_0001>

<llo_original>
// kernel: backbone_forward_t.1
$region0: #{backbone_forward_t.1}
  #allocation0 [shape = 'u32[]', space=smem, size = 0x4, offset = 0x4, fixed_abs, tag = 'smem constant byte address 0x4 - core index']
  #allocation1 [shape = 'u32[144,128]{1,0:T(1,128)}', space=vmem, size = 0x12000, scoped, tag = 'internal scratch']
  %s0 = inlined_call_operand.vmem [shape: f32[2,384], index: 0, kind: input, shape index: {}]
  %s1 = inlined_call_operand.vmem [shape: f32[32,40], index: 1, kind: input, shape index: {}]
  %s2 = inlined_call_operand.hbm [shape: f32[2,384], index: 2, kind: output, shape index: {}]
  %s3 = sld [smem:[#allocation0]]
  $region41: #{backbone_forward_t.1} parent=0
    _
  %s5 = ssub.s32 1, %s3
  %s6 = scalar_select 0, %s5, %s3
  $region1: #{backbone_forward_t.1} parent=0
    #allocation2 [shape = 'u8[2048]{0}', space=vmem, size = 0x800, scoped, tag = 'output window, operand 0']
    #allocation3 [shape = 's32[2]{0}', space=sflag, size = 0x8, scoped, tag = 'scoped memory for backbone_forward_t.1']
    %7 = vsyncpa [#allocation3], 0
    %s8 = scalar_lea.sflag [#allocation3], 1
    %9 = vsyncpa %s8, 0
    loop: start=0, step=1, limit=5
    $region2: #{backbone_forward_t.1} parent=1 // loop_pre_header
      _
    $region3: #{backbone_forward_t.1} parent=1 // loop_header
      %s11 = sphi 0, %s15
      %p12 = scmp.ge.s32.totalorder %s11, 5
      %s21 = sphi 0, %s23
      %s24 = sphi 0, %s21
      %s25 = sphi 0, %s24
      %s41 = sphi 0, %s25
      %s45 = sphi 0, %s45
      %s47 = sphi 0, %s45
      %s48 = sphi 0, %s47
      %s62 = sphi 0, %s48
      %s68 = sphi 0, %s70
      %s71 = sphi 0, %s68
      %s72 = sphi 0, %s71
      %s88 = sphi 0, %s72
    $region4: #{backbone_forward_t.1} parent=1 // loop_header_branch
      %14 = sbr.rel (%p12) target = $region8
    $region5: #{backbone_forward_t.1} parent=1 // loop_body
      %s16 = ssub.s32 %s11, 1
      %s17 = ssub.s32 %s11, 2
      %s18 = sadd.s32 %s11, 1
      %s19 = ssub.s32 %s11, %s18
      %p20 = scmp.eq.s32.totalorder %s19, 0
      %s22 = sadd.s32 %s21, 1
      %s23 = scalar_select %p20, %s21, %s22
      %p26 = pneg %p20
      %p27 = scmp.eq.s32.totalorder %s11, 2
      %p28 = por %p26, %p27
      %p29 = scmp.ne.s32.totalorder %s21, %s24
      %p30 = scmp.eq.s32.totalorder %s11, 0
      %p31 = por %p29, %p30
      %p32 = scmp.ne.s32.totalorder %s21, %s24
      %p33 = scmp.eq.s32.totalorder %s16, 2
      %p34 = por %p32, %p33
      %p35 = scmp.ne.s32.totalorder %s24, %s25
      %p36 = scmp.eq.s32.totalorder %s16, 0
      %p37 = por %p35, %p36
      %p38 = scmp.ne.s32.totalorder %s24, %s25
      %p39 = scmp.eq.s32.totalorder %s17, 2
      %p40 = por %p38, %p39
      %p42 = scmp.ne.s32.totalorder %s25, %s41
      %p43 = scmp.eq.s32.totalorder %s17, 0
      %p44 = por %p42, %p43
      %s46 = sadd.s32 %s45, 1
      %p49 = scmp.eq.s32.totalorder %s11, 2
      %p50 = scmp.ne.s32.totalorder %s45, %s47
      %p51 = scmp.eq.s32.totalorder %s11, 0
      %p52 = por %p50, %p51
      %p53 = scmp.ne.s32.totalorder %s45, %s47
      %p54 = scmp.eq.s32.totalorder %s16, 2
      %p55 = por %p53, %p54
      %p56 = scmp.ne.s32.totalorder %s47, %s48
      %p57 = scmp.eq.s32.totalorder %s16, 0
      %p58 = por %p56, %p57
      %p59 = scmp.ne.s32.totalorder %s47, %s48
      %p60 = scmp.eq.s32.totalorder %s17, 2
      %p61 = por %p59, %p60
      %p63 = scmp.ne.s32.totalorder %s48, %s62
      %p64 = scmp.eq.s32.totalorder %s17, 0
      %p65 = por %p63, %p64
      %s66 = ssub.s32 %s11, %s18
      %p67 = scmp.eq.s32.totalorder %s66, 0
      %s69 = sadd.s32 %s68, 1
      %s70 = scalar_select %p67, %s68, %s69
      %p73 = pneg %p67
      %p74 = scmp.eq.s32.totalorder %s11, 2
      %p75 = por %p73, %p74
      %p76 = scmp.ne.s32.totalorder %s68, %s71
      %p77 = scmp.eq.s32.totalorder %s11, 0
      %p78 = por %p76, %p77
      %p79 = scmp.ne.s32.totalorder %s68, %s71
      %p80 = scmp.eq.s32.totalorder %s16, 2
      %p81 = por %p79, %p80
      %p82 = scmp.ne.s32.totalorder %s71, %s72
      %p83 = scmp.eq.s32.totalorder %s16, 0
      %p84 = por %p82, %p83
      %p85 = scmp.ne.s32.totalorder %s71, %s72
      %p86 = scmp.eq.s32.totalorder %s17, 2
      %p87 = por %p85, %p86
      %p89 = scmp.ne.s32.totalorder %s72, %s88
      %p90 = scmp.eq.s32.totalorder %s17, 0
      %p91 = por %p89, %p90
      %p92 = scmp.le.s32.totalorder 1, %s11
      %p93 = scmp.lt.s32.totalorder %s11, 4
      %p94 = pnand %p92, %p93
      %p95 = pneg %p94
      // Predicated region
      $region9: #{backbone_forward_t.1} parent=5 // pred_check
        _
      $region10: #{backbone_forward_t.1} parent=5 // pred_check_branch
        %97 = sbr.rel (%p94) target = $region12
      $region11: #{backbone_forward_t.1} parent=5 // pred_region
        %s98 = ssub.s32 %s11, 1
        // Predicated region
        $region13: #{backbone_forward_t.1} parent=11 // pred_check
          %p99 = pneg %p58
        $region14: #{backbone_forward_t.1} parent=11 // pred_check_branch
          %101 = sbr.rel (%p99) target = $region16
        $region15: #{backbone_forward_t.1} parent=11 // pred_region
          _
        $region16: #{backbone_forward_t.1} parent=11 // pred_fallthru
          _
      $region12: #{backbone_forward_t.1} parent=5 // pred_fallthru
        _
      %p102 = scmp.lt.s32.totalorder %s11, 3
      // Predicated region
      $region17: #{backbone_forward_t.1} parent=5 // pred_check
        %p103 = pneg %p102
      $region18: #{backbone_forward_t.1} parent=5 // pred_check_branch
        %105 = sbr.rel (%p103) target = $region20
      $region19: #{backbone_forward_t.1} parent=5 // pred_region
        // Predicated region
        $region21: #{backbone_forward_t.1} parent=19 // pred_check
          %p106 = pneg %p31
        $region22: #{backbone_forward_t.1} parent=19 // pred_check_branch
          %108 = sbr.rel (%p106) target = $region24
        $region23: #{backbone_forward_t.1} parent=19 // pred_region
          %p109 = scmp.lt.s32.totalorder %s11, 2
          %s110 = scalar_select %p109, %s11, 2
          %s111 = smul.addr %s110, 2
          %s112 = scalar_lea.vmem %s0, %s111
        $region24: #{backbone_forward_t.1} parent=19 // pred_fallthru
          _
      $region20: #{backbone_forward_t.1} parent=5 // pred_fallthru
        _
      %p113 = scmp.le.s32.totalorder 1, %s11
      %p114 = scmp.lt.s32.totalorder %s11, 4
      %p115 = pnand %p113, %p114
      %p116 = pneg %p115
      // Predicated region
      $region25: #{backbone_forward_t.1} parent=5 // pred_check
        _
      $region26: #{backbone_forward_t.1} parent=5 // pred_check_branch
        %118 = sbr.rel (%p115) target = $region28
      $region27: #{backbone_forward_t.1} parent=5 // pred_region
        %s119 = ssub.s32 %s11, 1
        %p120 = scmp.lt.s32.totalorder %s16, 2
        %s121 = scalar_select %p120, %s16, 2
        %s122 = smul.addr %s121, 2
        %s123 = scalar_lea.vmem %s0, %s122
        %p124 = pneg %p37
        %p125 = pneg %p34
        %p126 = pneg %p58
        %p127 = pneg %p55
        %p128 = pneg %p84
        %p129 = pneg %p81
        %s130 = sand.u32 %s71, 1
        %s131 = scalar_lea.sflag [#allocation3], %s130
        %s132 = sand.u32 %s71, 1
        %s133 = smul.addr %s132, 2
        %s134 = scalar_lea.vmem [#allocation2], %s133
        %p135 = scmp.lt.s32.totalorder %s16, 2
        %s136 = scalar_select %p135, %s16, 2
        %s137 = smul.addr %s136, 2
        %s138 = scalar_lea.vmem %s0, %s137
        %v139 = vld [vmem:[%s138] sm:$0x3]
        %v140 = vld [vmem:[%s1] sm:$0xff]
        %v141 = vld [vmem:[%s1 + $0x8] sm:$0xff]
        %v142 = vld [vmem:[%s1 + $0x10] sm:$0xff]
        %v143 = vld [vmem:[%s1 + $0x18] sm:$0x3f]
        %v144 = vld [vmem:[%s1 + $0x1e] sm:$0x3]
        %146 = vset.pattern.permute.xlu0 32
        %147 = vperm.xlu0 %146, %v140
        %v148 = vpop.permute.xlu0 %147
        %151 = vset.pattern.permute.xlu0 32
        %152 = vperm.xlu0 %151, %v141
        %v153 = vpop.permute.xlu0 %152
        %156 = vset.pattern.permute.xlu0 32
        %157 = vperm.xlu0 %156, %v142
        %v158 = vpop.permute.xlu0 %157
        %161 = vset.pattern.permute.xlu0 32
        %162 = vperm.xlu0 %161, %v143
        %v163 = vpop.permute.xlu0 %162
        %165 = vrot.lane.b32.xlu0 %v140, 98
        %v166 = vpop.permute.xlu0 %165
        %167 = vrot.lane.b32.xlu0 %v141, 98
        %v168 = vpop.permute.xlu0 %167
        %169 = vrot.lane.b32.xlu0 %v142, 98
        %v170 = vpop.permute.xlu0 %169
        %171 = vrot.lane.b32.xlu0 %v143, 98
        %v172 = vpop.permute.xlu0 %171
        %vm173 = vcmask 15360
        %v174 = vsel %vm173, %v166, 0
        %v176 = vsel %vm173, %v168, 0
        %v178 = vsel %vm173, %v170, 0
        %v180 = vsel %vm173, %v172, 0
        %vm182 = vcmask 1041408
        %v184 = vsel %vm182, %v139, 0
        %186 = vmatprep.subr.mxu0 0.0
        %v187 = vand.u32 %v184, 4294901760
        %188 = vmatpush1.msra.mxu0 %v187
        %189 = vmatprep.subr.mxu0 0.0
        %190 = vmatpush1.msra.mxu0 0.0
        %191 = vmatprep.subr.mxu0 0.0
        %192 = vmatpush1.msra.mxu0 0.0
        %193 = vmatprep.subr.mxu0 0.0
        %194 = vmatpush1.msra.mxu0 0.0
        %195 = vmatprep.subr.mxu0 0.0
        %196 = vmatpush1.msra.mxu0 0.0
        %197 = vmatprep.subr.mxu0 0.0
        %198 = vmatpush1.msra.mxu0 0.0
        %199 = vmatprep.subr.mxu0 0.0
        %200 = vmatpush1.msra.mxu0 0.0
        %201 = vmatprep.subr.mxu0 0.0
        %202 = vmatpush1.msra.mxu0 0.0
        %203 = vmatprep.subr.mxu0 0.0
        %204 = vmatpush1.msra.mxu0 0.0
        %205 = vmatprep.subr.mxu0 0.0
        %206 = vmatpush1.msra.mxu0 0.0
        %207 = vmatprep.subr.mxu0 0.0
        %208 = vmatpush1.msra.mxu0 0.0
        %209 = vmatprep.subr.mxu0 0.0
        %210 = vmatpush1.msra.mxu0 0.0
        %211 = vmatprep.subr.mxu0 0.0
        %212 = vmatpush1.msra.mxu0 0.0
        %213 = vmatprep.subr.mxu0 0.0
        %214 = vmatpush1.msra.mxu0 0.0
        %215 = vmatprep.subr.mxu0 0.0
        %216 = vmatpush1.msra.mxu0 0.0
        %217 = vmatprep.subr.mxu0 0.0
        %218 = vmatpush1.msra.mxu0 0.0
        %219 = vmatprep.subr.mxu0 0.0
        %220 = vmatpush1.msra.mxu0 0.0
        %221 = vmatprep.subr.mxu0 0.0
        %222 = vmatpush1.msra.mxu0 0.0
        %223 = vmatprep.subr.mxu0 0.0
        %224 = vmatpush1.msra.mxu0 0.0
        %225 = vmatprep.subr.mxu0 0.0
        %226 = vmatpush1.msra.mxu0 0.0
        %227 = vmatprep.subr.mxu0 0.0
        %228 = vmatpush1.msra.mxu0 0.0
        %229 = vmatprep.subr.mxu0 0.0
        %230 = vmatpush1.msra.mxu0 0.0
        %231 = vmatprep.subr.mxu0 0.0
        %232 = vmatpush1.msra.mxu0 0.0
        %233 = vmatprep.subr.mxu0 0.0
        %234 = vmatpush1.msra.mxu0 0.0
        %235 = vmatprep.subr.mxu0 0.0
        %236 = vmatpush1.msra.mxu0 0.0
        %237 = vmatprep.subr.mxu0 0.0
        %238 = vmatpush1.msra.mxu0 0.0
        %239 = vmatprep.subr.mxu0 0.0
        %240 = vmatpush1.msra.mxu0 0.0
        %241 = vmatprep.subr.mxu0 0.0
        %242 = vmatpush1.msra.mxu0 0.0
        %243 = vmatprep.subr.mxu0 0.0
        %244 = vmatpush1.msra.mxu0 0.0
        %245 = vmatprep.subr.mxu0 0.0
        %246 = vmatpush1.msra.mxu0 0.0
        %247 = vmatprep.subr.mxu0 0.0
        %248 = vmatpush1.msra.mxu0 0.0
        %249 = vmatprep.subr.mxu0 0.0
        %250 = vmatpush1.msra.mxu0 0.0
        %251 = vmatprep.mubr.f32.mxu0 0.0
        %v252 = vand.u32 %v174, 4294901760
        %v253 = vsub.f32 %v174, %v252
        %v254 = vand.u32 %v253, 4294901760
        %v255 = vsub.f32 %v253, %v254
        %v256 = vand.u32 %v255, 4294901760
        %257 = vmatmul.mubr.f32.gmra.mrb[0].mxu0 %v256
        %v258 = vpop.f32.mrb[0].mxu0
        %v259 = vadd.f32 %v148, %v258
        %v260 = vpop.f32.mrb[0].mxu0
        %261 = vmatprep.mubr.f32.mxu0 0.0
        %v262 = vand.u32 %v176, 4294901760
        %v263 = vsub.f32 %v176, %v262
        %v264 = vand.u32 %v263, 4294901760
        %v265 = vsub.f32 %v263, %v264
        %v266 = vand.u32 %v265, 4294901760
        %267 = vmatmul.mubr.f32.gmra.mrb[0].mxu0 %v266
        %v268 = vpop.f32.mrb[0].mxu0
        %v269 = vadd.f32 %v153, %v268
        %v270 = vpop.f32.mrb[0].mxu0
        %271 = vmatprep.mubr.f32.mxu0 0.0
        %v272 = vand.u32 %v178, 4294901760
        %v273 = vsub.f32 %v178, %v272
        %v274 = vand.u32 %v273, 4294901760
        %v275 = vsub.f32 %v273, %v274
        %v276 = vand.u32 %v275, 4294901760
        %277 = vmatmul.mubr.f32.gmra.mrb[0].mxu0 %v276
        %v278 = vpop.f32.mrb[0].mxu0
        %v279 = vadd.f32 %v158, %v278
        %v280 = vpop.f32.mrb[0].mxu0
        %281 = vmatprep.mubr.f32.mxu0 0.0
        %v282 = vand.u32 %v180, 4294901760
        %v283 = vsub.f32 %v180, %v282
        %v284 = vand.u32 %v283, 4294901760
        %v285 = vsub.f32 %v283, %v284
        %v286 = vand.u32 %v285, 4294901760
        %287 = vmatmul.mubr.f32.gmra.mrb[0].mxu0 %v286
        %v288 = vpop.f32.mrb[0].mxu0
        %v289 = vadd.f32 %v163, %v288
        %v290 = vpop.f32.mrb[0].mxu0
        %291 = vdwg.mxu0
        %292 = vmatprep.subr.mxu0 0.0
        %v293 = vand.u32 %v184, 4294901760
        %v294 = vsub.f32 %v184, %v293
        %v295 = vand.u32 %v294, 4294901760
        %v296 = vsub.f32 %v294, %v295
        %v297 = vand.u32 %v296, 4294901760
        %298 = vmatpush1.msra.mxu0 %v297
        %299 = vmatprep.subr.mxu0 0.0
        %300 = vmatpush1.msra.mxu0 0.0
        %301 = vmatprep.subr.mxu0 0.0
        %302 = vmatpush1.msra.mxu0 0.0
        %303 = vmatprep.subr.mxu0 0.0
        %304 = vmatpush1.msra.mxu0 0.0
        %305 = vmatprep.subr.mxu0 0.0
        %306 = vmatpush1.msra.mxu0 0.0
        %307 = vmatprep.subr.mxu0 0.0
        %308 = vmatpush1.msra.mxu0 0.0
        %309 = vmatprep.subr.mxu0 0.0
        %310 = vmatpush1.msra.mxu0 0.0
        %311 = vmatprep.subr.mxu0 0.0
        %312 = vmatpush1.msra.mxu0 0.0
        %313 = vmatprep.subr.mxu0 0.0
        %314 = vmatpush1.msra.mxu0 0.0
        %315 = vmatprep.subr.mxu0 0.0
        %316 = vmatpush1.msra.mxu0 0.0
        %317 = vmatprep.subr.mxu0 0.0
        %318 = vmatpush1.msra.mxu0 0.0
        %319 = vmatprep.subr.mxu0 0.0
        %320 = vmatpush1.msra.mxu0 0.0
        %321 = vmatprep.subr.mxu0 0.0
        %322 = vmatpush1.msra.mxu0 0.0
        %323 = vmatprep.subr.mxu0 0.0
        %324 = vmatpush1.msra.mxu0 0.0
        %325 = vmatprep.subr.mxu0 0.0
        %326 = vmatpush1.msra.mxu0 0.0
        %327 = vmatprep.subr.mxu0 0.0
        %328 = vmatpush1.msra.mxu0 0.0
        %329 = vmatprep.subr.mxu0 0.0
        %330 = vmatpush1.msra.mxu0 0.0
        %331 = vmatprep.subr.mxu0 0.0
        %332 = vmatpush1.msra.mxu0 0.0
        %333 = vmatprep.subr.mxu0 0.0
        %334 = vmatpush1.msra.mxu0 0.0
        %335 = vmatprep.subr.mxu0 0.0
        %336 = vmatpush1.msra.mxu0 0.0
        %337 = vmatprep.subr.mxu0 0.0
        %338 = vmatpush1.msra.mxu0 0.0
        %339 = vmatprep.subr.mxu0 0.0
        %340 = vmatpush1.msra.mxu0 0.0
        %341 = vmatprep.subr.mxu0 0.0
        %342 = vmatpush1.msra.mxu0 0.0
        %343 = vmatprep.subr.mxu0 0.0
        %344 = vmatpush1.msra.mxu0 0.0
        %345 = vmatprep.subr.mxu0 0.0
        %346 = vmatpush1.msra.mxu0 0.0
        %347 = vmatprep.subr.mxu0 0.0
        %348 = vmatpush1.msra.mxu0 0.0
        %349 = vmatprep.subr.mxu0 0.0
        %350 = vmatpush1.msra.mxu0 0.0
        %351 = vmatprep.subr.mxu0 0.0
        %352 = vmatpush1.msra.mxu0 0.0
        %353 = vmatprep.subr.mxu0 0.0
        %354 = vmatpush1.msra.mxu0 0.0
        %355 = vmatprep.subr.mxu0 0.0
        %356 = vmatpush1.msra.mxu0 0.0
        %357 = vmatprep.subr.mxu0 0.0
        %358 = vmatpush1.msra.mxu0 0.0
        %359 = vmatprep.subr.mxu0 0.0
        %360 = vmatpush1.msra.mxu0 0.0
        %361 = vmatprep.mubr.f32.mxu0 0.0
        %v362 = vand.u32 %v174, 4294901760
        %363 = vmatmul.mubr.f32.gmra.mrb[0].mxu0 %v362
        %v364 = vpop.f32.mrb[0].mxu0
        %v365 = vadd.f32 %v259, %v364
        %v366 = vpop.f32.mrb[0].mxu0
        %367 = vmatprep.mubr.f32.mxu0 0.0
        %v368 = vand.u32 %v176, 4294901760
        %369 = vmatmul.mubr.f32.gmra.mrb[0].mxu0 %v368
        %v370 = vpop.f32.mrb[0].mxu0
        %v371 = vadd.f32 %v269, %v370
        %v372 = vpop.f32.mrb[0].mxu0
        %373 = vmatprep.mubr.f32.mxu0 0.0
        %v374 = vand.u32 %v178, 4294901760
        %375 = vmatmul.mubr.f32.gmra.mrb[0].mxu0 %v374
        %v376 = vpop.f32.mrb[0].mxu0
        %v377 = vadd.f32 %v279, %v376
        %v378 = vpop.f32.mrb[0].mxu0
        %379 = vmatprep.mubr.f32.mxu0 0.0
        %v380 = vand.u32 %v180, 4294901760
        %381 = vmatmul.mubr.f32.gmra.mrb[0].mxu0 %v380
        %v382 = vpop.f32.mrb[0].mxu0
        %v383 = vadd.f32 %v289, %v382
        %v384 = vpop.f32.mrb[0].mxu0
        %385 = vdwg.mxu0
        %386 = vmatprep.subr.mxu0 0.0
        %v387 = vand.u32 %v184, 4294901760
        %v388 = vsub.f32 %v184, %v387
        %389 = vmatpush1.msra.mxu0 %v388
        %390 = vmatprep.subr.mxu0 0.0
        %391 = vmatpush1.msra.mxu0 0.0
        %392 = vmatprep.subr.mxu0 0.0
        %393 = vmatpush1.msra.mxu0 0.0
        %394 = vmatprep.subr.mxu0 0.0
        %395 = vmatpush1.msra.mxu0 0.0
        %396 = vmatprep.subr.mxu0 0.0
        %397 = vmatpush1.msra.mxu0 0.0
        %398 = vmatprep.subr.mxu0 0.0
        %399 = vmatpush1.msra.mxu0 0.0
        %400 = vmatprep.subr.mxu0 0.0
        %401 = vmatpush1.msra.mxu0 0.0
        %402 = vmatprep.subr.mxu0 0.0
        %403 = vmatpush1.msra.mxu0 0.0
        %404 = vmatprep.subr.mxu0 0.0
        %405 = vmatpush1.msra.mxu0 0.0
        %406 = vmatprep.subr.mxu0 0.0
        %407 = vmatpush1.msra.mxu0 0.0
        %408 = vmatprep.subr.mxu0 0.0
        %409 = vmatpush1.msra.mxu0 0.0
        %410 = vmatprep.subr.mxu0 0.0
        %411 = vmatpush1.msra.mxu0 0.0
        %412 = vmatprep.subr.mxu0 0.0
        %413 = vmatpush1.msra.mxu0 0.0
        %414 = vmatprep.subr.mxu0 0.0
        %415 = vmatpush1.msra.mxu0 0.0
        %416 = vmatprep.subr.mxu0 0.0
        %417 = vmatpush1.msra.mxu0 0.0
        %418 = vmatprep.subr.mxu0 0.0
        %419 = vmatpush1.msra.mxu0 0.0
        %420 = vmatprep.subr.mxu0 0.0
        %421 = vmatpush1.msra.mxu0 0.0
        %422 = vmatprep.subr.mxu0 0.0
        %423 = vmatpush1.msra.mxu0 0.0
        %424 = vmatprep.subr.mxu0 0.0
        %425 = vmatpush1.msra.mxu0 0.0
        %426 = vmatprep.subr.mxu0 0.0
        %427 = vmatpush1.msra.mxu0 0.0
        %428 = vmatprep.subr.mxu0 0.0
        %429 = vmatpush1.msra.mxu0 0.0
        %430 = vmatprep.subr.mxu0 0.0
        %431 = vmatpush1.msra.mxu0 0.0
        %432 = vmatprep.subr.mxu0 0.0
        %433 = vmatpush1.msra.mxu0 0.0
        %434 = vmatprep.subr.mxu0 0.0
        %435 = vmatpush1.msra.mxu0 0.0
        %436 = vmatprep.subr.mxu0 0.0
        %437 = vmatpush1.msra.mxu0 0.0
        %438 = vmatprep.subr.mxu0 0.0
        %439 = vmatpush1.msra.mxu0 0.0
        %440 = vmatprep.subr.mxu0 0.0
        %441 = vmatpush1.msra.mxu0 0.0
        %442 = vmatprep.subr.mxu0 0.0
        %443 = vmatpush1.msra.mxu0 0.0
        %444 = vmatprep.subr.mxu0 0.0
        %445 = vmatpush1.msra.mxu0 0.0
        %446 = vmatprep.subr.mxu0 0.0
        %447 = vmatpush1.msra.mxu0 0.0
        %448 = vmatprep.subr.mxu0 0.0
        %449 = vmatpush1.msra.mxu0 0.0
        %450 = vmatprep.subr.mxu0 0.0
        %451 = vmatpush1.msra.mxu0 0.0
        %452 = vmatprep.mubr.f32.mxu0 0.0
        %v453 = vand.u32 %v174, 4294901760
        %v454 = vsub.f32 %v174, %v453
        %455 = vmatmul.mubr.f32.gmra.mrb[0].mxu0 %v454
        %v456 = vpop.f32.mrb[0].mxu0
        %v457 = vadd.f32 %v365, %v456
        %v458 = vpop.f32.mrb[0].mxu0
        %459 = vmatprep.mubr.f32.mxu0 0.0
        %v460 = vand.u32 %v176, 4294901760
        %v461 = vsub.f32 %v176, %v460
        %462 = vmatmul.mubr.f32.gmra.mrb[0].mxu0 %v461
        %v463 = vpop.f32.mrb[0].mxu0
        %v464 = vadd.f32 %v371, %v463
        %v465 = vpop.f32.mrb[0].mxu0
        %466 = vmatprep.mubr.f32.mxu0 0.0
        %v467 = vand.u32 %v178, 4294901760
        %v468 = vsub.f32 %v178, %v467
        %469 = vmatmul.mubr.f32.gmra.mrb[0].mxu0 %v468
        %v470 = vpop.f32.mrb[0].mxu0
        %v471 = vadd.f32 %v377, %v470
        %v472 = vpop.f32.mrb[0].mxu0
        %473 = vmatprep.mubr.f32.mxu0 0.0
        %v474 = vand.u32 %v180, 4294901760
        %v475 = vsub.f32 %v180, %v474
        %476 = vmatmul.mubr.f32.gmra.mrb[0].mxu0 %v475
        %v477 = vpop.f32.mrb[0].mxu0
        %v478 = vadd.f32 %v383, %v477
        %v479 = vpop.f32.mrb[0].mxu0
        %480 = vdwg.mxu0
        %481 = vmatprep.subr.mxu0 0.0
        %v482 = vand.u32 %v184, 4294901760
        %483 = vmatpush1.msra.mxu0 %v482
        %484 = vmatprep.subr.mxu0 0.0
        %485 = vmatpush1.msra.mxu0 0.0
        %486 = vmatprep.subr.mxu0 0.0
        %487 = vmatpush1.msra.mxu0 0.0
        %488 = vmatprep.subr.mxu0 0.0
        %489 = vmatpush1.msra.mxu0 0.0
        %490 = vmatprep.subr.mxu0 0.0
        %491 = vmatpush1.msra.mxu0 0.0
        %492 = vmatprep.subr.mxu0 0.0
        %493 = vmatpush1.msra.mxu0 0.0
        %494 = vmatprep.subr.mxu0 0.0
        %495 = vmatpush1.msra.mxu0 0.0
        %496 = vmatprep.subr.mxu0 0.0
        %497 = vmatpush1.msra.mxu0 0.0
        %498 = vmatprep.subr.mxu0 0.0
        %499 = vmatpush1.msra.mxu0 0.0
        %500 = vmatprep.subr.mxu0 0.0
        %501 = vmatpush1.msra.mxu0 0.0
        %502 = vmatprep.subr.mxu0 0.0
        %503 = vmatpush1.msra.mxu0 0.0
        %504 = vmatprep.subr.mxu0 0.0
        %505 = vmatpush1.msra.mxu0 0.0
        %506 = vmatprep.subr.mxu0 0.0
        %507 = vmatpush1.msra.mxu0 0.0
        %508 = vmatprep.subr.mxu0 0.0
        %509 = vmatpush1.msra.mxu0 0.0
        %510 = vmatprep.subr.mxu0 0.0
        %511 = vmatpush1.msra.mxu0 0.0
        %512 = vmatprep.subr.mxu0 0.0
        %513 = vmatpush1.msra.mxu0 0.0
        %514 = vmatprep.subr.mxu0 0.0
        %515 = vmatpush1.msra.mxu0 0.0
        %516 = vmatprep.subr.mxu0 0.0
        %517 = vmatpush1.msra.mxu0 0.0
        %518 = vmatprep.subr.mxu0 0.0
        %519 = vmatpush1.msra.mxu0 0.0
        %520 = vmatprep.subr.mxu0 0.0
        %521 = vmatpush1.msra.mxu0 0.0
        %522 = vmatprep.subr.mxu0 0.0
        %523 = vmatpush1.msra.mxu0 0.0
        %524 = vmatprep.subr.mxu0 0.0
        %525 = vmatpush1.msra.mxu0 0.0
        %526 = vmatprep.subr.mxu0 0.0
        %527 = vmatpush1.msra.mxu0 0.0
        %528 = vmatprep.subr.mxu0 0.0
        %529 = vmatpush1.msra.mxu0 0.0
        %530 = vmatprep.subr.mxu0 0.0
        %531 = vmatpush1.msra.mxu0 0.0
        %532 = vmatprep.subr.mxu0 0.0
        %533 = vmatpush1.msra.mxu0 0.0
        %534 = vmatprep.subr.mxu0 0.0
        %535 = vmatpush1.msra.mxu0 0.0
        %536 = vmatprep.subr.mxu0 0.0
        %537 = vmatpush1.msra.mxu0 0.0
        %538 = vmatprep.subr.mxu0 0.0
        %539 = vmatpush1.msra.mxu0 0.0
        %540 = vmatprep.subr.mxu0 0.0
        %541 = vmatpush1.msra.mxu0 0.0
        %542 = vmatprep.subr.mxu0 0.0
        %543 = vmatpush1.msra.mxu0 0.0
        %544 = vmatprep.subr.mxu0 0.0
        %545 = vmatpush1.msra.mxu0 0.0
        %546 = vmatprep.mubr.f32.mxu0 0.0
        %v547 = vand.u32 %v174, 4294901760
        %v548 = vsub.f32 %v174, %v547
        %v549 = vand.u32 %v548, 4294901760
        %550 = vmatmul.mubr.f32.gmra.mrb[0].mxu0 %v549
        %v551 = vpop.f32.mrb[0].mxu0
        %v552 = vadd.f32 %v457, %v551
        %v553 = vpop.f32.mrb[0].mxu0
        %554 = vmatprep.mubr.f32.mxu0 0.0
        %v555 = vand.u32 %v176, 4294901760
        %v556 = vsub.f32 %v176, %v555
        %v557 = vand.u32 %v556, 4294901760
        %558 = vmatmul.mubr.f32.gmra.mrb[0].mxu0 %v557
        %v559 = vpop.f32.mrb[0].mxu0
        %v560 = vadd.f32 %v464, %v559
        %v561 = vpop.f32.mrb[0].mxu0
        %562 = vmatprep.mubr.f32.mxu0 0.0
        %v563 = vand.u32 %v178, 4294901760
        %v564 = vsub.f32 %v178, %v563
        %v565 = vand.u32 %v564, 4294901760
        %566 = vmatmul.mubr.f32.gmra.mrb[0].mxu0 %v565
        %v567 = vpop.f32.mrb[0].mxu0
        %v568 = vadd.f32 %v471, %v567
        %v569 = vpop.f32.mrb[0].mxu0
        %570 = vmatprep.mubr.f32.mxu0 0.0
        %v571 = vand.u32 %v180, 4294901760
        %v572 = vsub.f32 %v180, %v571
        %v573 = vand.u32 %v572, 4294901760
        %574 = vmatmul.mubr.f32.gmra.mrb[0].mxu0 %v573
        %v575 = vpop.f32.mrb[0].mxu0
        %v576 = vadd.f32 %v478, %v575
        %v577 = vpop.f32.mrb[0].mxu0
        %578 = vdwg.mxu0
        %579 = vmatprep.subr.mxu0 0.0
        %v580 = vand.u32 %v184, 4294901760
        %v581 = vsub.f32 %v184, %v580
        %v582 = vand.u32 %v581, 4294901760
        %583 = vmatpush1.msra.mxu0 %v582
        %584 = vmatprep.subr.mxu0 0.0
        %585 = vmatpush1.msra.mxu0 0.0
        %586 = vmatprep.subr.mxu0 0.0
        %587 = vmatpush1.msra.mxu0 0.0
        %588 = vmatprep.subr.mxu0 0.0
        %589 = vmatpush1.msra.mxu0 0.0
        %590 = vmatprep.subr.mxu0 0.0
        %591 = vmatpush1.msra.mxu0 0.0
        %592 = vmatprep.subr.mxu0 0.0
        %593 = vmatpush1.msra.mxu0 0.0
        %594 = vmatprep.subr.mxu0 0.0
        %595 = vmatpush1.msra.mxu0 0.0
        %596 = vmatprep.subr.mxu0 0.0
        %597 = vmatpush1.msra.mxu0 0.0
        %598 = vmatprep.subr.mxu0 0.0
        %599 = vmatpush1.msra.mxu0 0.0
        %600 = vmatprep.subr.mxu0 0.0
        %601 = vmatpush1.msra.mxu0 0.0
        %602 = vmatprep.subr.mxu0 0.0
        %603 = vmatpush1.msra.mxu0 0.0
        %604 = vmatprep.subr.mxu0 0.0
        %605 = vmatpush1.msra.mxu0 0.0
        %606 = vmatprep.subr.mxu0 0.0
        %607 = vmatpush1.msra.mxu0 0.0
        %608 = vmatprep.subr.mxu0 0.0
        %609 = vmatpush1.msra.mxu0 0.0
        %610 = vmatprep.subr.mxu0 0.0
        %611 = vmatpush1.msra.mxu0 0.0
        %612 = vmatprep.subr.mxu0 0.0
        %613 = vmatpush1.msra.mxu0 0.0
        %614 = vmatprep.subr.mxu0 0.0
        %615 = vmatpush1.msra.mxu0 0.0
        %616 = vmatprep.subr.mxu0 0.0
        %617 = vmatpush1.msra.mxu0 0.0
        %618 = vmatprep.subr.mxu0 0.0
        %619 = vmatpush1.msra.mxu0 0.0
        %620 = vmatprep.subr.mxu0 0.0
        %621 = vmatpush1.msra.mxu0 0.0
        %622 = vmatprep.subr.mxu0 0.0
        %623 = vmatpush1.msra.mxu0 0.0
        %624 = vmatprep.subr.mxu0 0.0
        %625 = vmatpush1.msra.mxu0 0.0
        %626 = vmatprep.subr.mxu0 0.0
        %627 = vmatpush1.msra.mxu0 0.0
        %628 = vmatprep.subr.mxu0 0.0
        %629 = vmatpush1.msra.mxu0 0.0
        %630 = vmatprep.subr.mxu0 0.0
        %631 = vmatpush1.msra.mxu0 0.0
        %632 = vmatprep.subr.mxu0 0.0
        %633 = vmatpush1.msra.mxu0 0.0
        %634 = vmatprep.subr.mxu0 0.0
        %635 = vmatpush1.msra.mxu0 0.0
        %636 = vmatprep.subr.mxu0 0.0
        %637 = vmatpush1.msra.mxu0 0.0
        %638 = vmatprep.subr.mxu0 0.0
        %639 = vmatpush1.msra.mxu0 0.0
        %640 = vmatprep.subr.mxu0 0.0
        %641 = vmatpush1.msra.mxu0 0.0
        %642 = vmatprep.subr.mxu0 0.0
        %643 = vmatpush1.msra.mxu0 0.0
        %644 = vmatprep.subr.mxu0 0.0
        %645 = vmatpush1.msra.mxu0 0.0
        %646 = vmatprep.mubr.f32.mxu0 0.0
        %v647 = vand.u32 %v174, 4294901760
        %648 = vmatmul.mubr.f32.gmra.mrb[0].mxu0 %v647
        %v649 = vpop.f32.mrb[0].mxu0
        %v650 = vadd.f32 %v552, %v649
        %v651 = vpop.f32.mrb[0].mxu0
        %652 = vmatprep.mubr.f32.mxu0 0.0
        %v653 = vand.u32 %v176, 4294901760
        %654 = vmatmul.mubr.f32.gmra.mrb[0].mxu0 %v653
        %v655 = vpop.f32.mrb[0].mxu0
        %v656 = vadd.f32 %v560, %v655
        %v657 = vpop.f32.mrb[0].mxu0
        %658 = vmatprep.mubr.f32.mxu0 0.0
        %v659 = vand.u32 %v178, 4294901760
        %660 = vmatmul.mubr.f32.gmra.mrb[0].mxu0 %v659
        %v661 = vpop.f32.mrb[0].mxu0
        %v662 = vadd.f32 %v568, %v661
        %v663 = vpop.f32.mrb[0].mxu0
        %664 = vmatprep.mubr.f32.mxu0 0.0
        %v665 = vand.u32 %v180, 4294901760
        %666 = vmatmul.mubr.f32.gmra.mrb[0].mxu0 %v665
        %v667 = vpop.f32.mrb[0].mxu0
        %v668 = vadd.f32 %v576, %v667
        %v669 = vpop.f32.mrb[0].mxu0
        %670 = vdwg.mxu0
        %671 = vmatprep.subr.mxu0 0.0
        %v672 = vand.u32 %v184, 4294901760
        %673 = vmatpush1.msra.mxu0 %v672
        %674 = vmatprep.subr.mxu0 0.0
        %675 = vmatpush1.msra.mxu0 0.0
        %676 = vmatprep.subr.mxu0 0.0
        %677 = vmatpush1.msra.mxu0 0.0
        %678 = vmatprep.subr.mxu0 0.0
        %679 = vmatpush1.msra.mxu0 0.0
        %680 = vmatprep.subr.mxu0 0.0
        %681 = vmatpush1.msra.mxu0 0.0
        %682 = vmatprep.subr.mxu0 0.0
        %683 = vmatpush1.msra.mxu0 0.0
        %684 = vmatprep.subr.mxu0 0.0
        %685 = vmatpush1.msra.mxu0 0.0
        %686 = vmatprep.subr.mxu0 0.0
        %687 = vmatpush1.msra.mxu0 0.0
        %688 = vmatprep.subr.mxu0 0.0
        %689 = vmatpush1.msra.mxu0 0.0
        %690 = vmatprep.subr.mxu0 0.0
        %691 = vmatpush1.msra.mxu0 0.0
        %692 = vmatprep.subr.mxu0 0.0
        %693 = vmatpush1.msra.mxu0 0.0
        %694 = vmatprep.subr.mxu0 0.0
        %695 = vmatpush1.msra.mxu0 0.0
        %696 = vmatprep.subr.mxu0 0.0
        %697 = vmatpush1.msra.mxu0 0.0
        %698 = vmatprep.subr.mxu0 0.0
        %699 = vmatpush1.msra.mxu0 0.0
        %700 = vmatprep.subr.mxu0 0.0
        %701 = vmatpush1.msra.mxu0 0.0
        %702 = vmatprep.subr.mxu0 0.0
        %703 = vmatpush1.msra.mxu0 0.0
        %704 = vmatprep.subr.mxu0 0.0
        %705 = vmatpush1.msra.mxu0 0.0
        %706 = vmatprep.subr.mxu0 0.0
        %707 = vmatpush1.msra.mxu0 0.0
        %708 = vmatprep.subr.mxu0 0.0
        %709 = vmatpush1.msra.mxu0 0.0
        %710 = vmatprep.subr.mxu0 0.0
        %711 = vmatpush1.msra.mxu0 0.0
        %712 = vmatprep.subr.mxu0 0.0
        %713 = vmatpush1.msra.mxu0 0.0
        %714 = vmatprep.subr.mxu0 0.0
        %715 = vmatpush1.msra.mxu0 0.0
        %716 = vmatprep.subr.mxu0 0.0
        %717 = vmatpush1.msra.mxu0 0.0
        %718 = vmatprep.subr.mxu0 0.0
        %719 = vmatpush1.msra.mxu0 0.0
        %720 = vmatprep.subr.mxu0 0.0
        %721 = vmatpush1.msra.mxu0 0.0
        %722 = vmatprep.subr.mxu0 0.0
        %723 = vmatpush1.msra.mxu0 0.0
        %724 = vmatprep.subr.mxu0 0.0
        %725 = vmatpush1.msra.mxu0 0.0
        %726 = vmatprep.subr.mxu0 0.0
        %727 = vmatpush1.msra.mxu0 0.0
        %728 = vmatprep.subr.mxu0 0.0
        %729 = vmatpush1.msra.mxu0 0.0
        %730 = vmatprep.subr.mxu0 0.0
        %731 = vmatpush1.msra.mxu0 0.0
        %732 = vmatprep.subr.mxu0 0.0
        %733 = vmatpush1.msra.mxu0 0.0
        %734 = vmatprep.subr.mxu0 0.0
        %735 = vmatpush1.msra.mxu0 0.0
        %736 = vmatprep.mubr.f32.mxu0 0.0
        %v737 = vand.u32 %v174, 4294901760
        %738 = vmatmul.mubr.f32.gmra.mrb[0].mxu0 %v737
        %v739 = vpop.f32.mrb[0].mxu0
        %v740 = vadd.f32 %v650, %v739
        %v741 = vpop.f32.mrb[0].mxu0
        %742 = vmatprep.mubr.f32.mxu0 0.0
        %v743 = vand.u32 %v176, 4294901760
        %744 = vmatmul.mubr.f32.gmra.mrb[0].mxu0 %v743
        %v745 = vpop.f32.mrb[0].mxu0
        %v746 = vadd.f32 %v656, %v745
        %v747 = vpop.f32.mrb[0].mxu0
        %748 = vmatprep.mubr.f32.mxu0 0.0
        %v749 = vand.u32 %v178, 4294901760
        %750 = vmatmul.mubr.f32.gmra.mrb[0].mxu0 %v749
        %v751 = vpop.f32.mrb[0].mxu0
        %v752 = vadd.f32 %v662, %v751
        %v753 = vpop.f32.mrb[0].mxu0
        %754 = vmatprep.mubr.f32.mxu0 0.0
        %v755 = vand.u32 %v180, 4294901760
        %756 = vmatmul.mubr.f32.gmra.mrb[0].mxu0 %v755
        %v757 = vpop.f32.mrb[0].mxu0
        %v758 = vadd.f32 %v668, %v757
        %v759 = vpop.f32.mrb[0].mxu0
        %760 = vdwg.mxu0
        %v761 = vmax.f32 %v740, 0.0
        %v762 = vmax.f32 %v746, 0.0
        %v763 = vmax.f32 %v752, 0.0
        %v764 = vmax.f32 %v758, 0.0
        %765 = vset.pattern.permute.xlu0 33
        %766 = vperm.xlu0 %765, %v140
        %v767 = vpop.permute.xlu0 %766
        %769 = vset.pattern.permute.xlu0 33
        %770 = vperm.xlu0 %769, %v141
        %v771 = vpop.permute.xlu0 %770
        %773 = vset.pattern.permute.xlu0 33
        %774 = vperm.xlu0 %773, %v142
        %v775 = vpop.permute.xlu0 %774
        %777 = vset.pattern.permute.xlu0 33
        %778 = vperm.xlu0 %777, %v143
        %v779 = vpop.permute.xlu0 %778
        %vm781 = vcmask 244736
        %v782 = vsel %vm781, %v140, 0
        %v784 = vsel %vm781, %v141, 0
        %v786 = vsel %vm781, %v142, 0
        %v788 = vsel %vm781, %v143, 0
        %vm790 = vcmask 1045504
        %v792 = vsel %vm790, %v764, 0
        %794 = vmatprep.subr.mxu0 0.0
        %v795 = vand.u32 %v761, 4294901760
        %796 = vmatpush1.msra.mxu0 %v795
        %797 = vmatprep.subr.mxu0 0.0
        %v798 = vand.u32 %v762, 4294901760
        %799 = vmatpush1.msra.mxu0 %v798
        %800 = vmatprep.subr.mxu0 0.0
        %v801 = vand.u32 %v763, 4294901760
        %802 = vmatpush1.msra.mxu0 %v801
        %803 = vmatprep.subr.mxu0 0.0
        %v804 = vand.u32 %v792, 4294901760
        %805 = vmatpush1.msra.mxu0 %v804
        %806 = vmatprep.subr.mxu0 0.0
        %807 = vmatpush1.msra.mxu0 0.0
        %808 = vmatprep.subr.mxu0 0.0
        %809 = vmatpush1.msra.mxu0 0.0
        %810 = vmatprep.subr.mxu0 0.0
        %811 = vmatpush1.msra.mxu0 0.0
        %812 = vmatprep.subr.mxu0 0.0
        %813 = vmatpush1.msra.mxu0 0.0
        %814 = vmatprep.subr.mxu0 0.0
        %815 = vmatpush1.msra.mxu0 0.0
        %816 = vmatprep.subr.mxu0 0.0
        %817 = vmatpush1.msra.mxu0 0.0
        %818 = vmatprep.subr.mxu0 0.0
        %819 = vmatpush1.msra.mxu0 0.0
        %820 = vmatprep.subr.mxu0 0.0
        %821 = vmatpush1.msra.mxu0 0.0
        %822 = vmatprep.subr.mxu0 0.0
        %823 = vmatpush1.msra.mxu0 0.0
        %824 = vmatprep.subr.mxu0 0.0
        %825 = vmatpush1.msra.mxu0 0.0
        %826 = vmatprep.subr.mxu0 0.0
        %827 = vmatpush1.msra.mxu0 0.0
        %828 = vmatprep.subr.mxu0 0.0
        %829 = vmatpush1.msra.mxu0 0.0
        %830 = vmatprep.subr.mxu0 0.0
        %831 = vmatpush1.msra.mxu0 0.0
        %832 = vmatprep.subr.mxu0 0.0
        %833 = vmatpush1.msra.mxu0 0.0
        %834 = vmatprep.subr.mxu0 0.0
        %835 = vmatpush1.msra.mxu0 0.0
        %836 = vmatprep.subr.mxu0 0.0
        %837 = vmatpush1.msra.mxu0 0.0
        %838 = vmatprep.subr.mxu0 0.0
        %839 = vmatpush1.msra.mxu0 0.0
        %840 = vmatprep.subr.mxu0 0.0
        %841 = vmatpush1.msra.mxu0 0.0
        %842 = vmatprep.subr.mxu0 0.0
        %843 = vmatpush1.msra.mxu0 0.0
        %844 = vmatprep.subr.mxu0 0.0
        %845 = vmatpush1.msra.mxu0 0.0
        %846 = vmatprep.subr.mxu0 0.0
        %847 = vmatpush1.msra.mxu0 0.0
        %848 = vmatprep.subr.mxu0 0.0
        %849 = vmatpush1.msra.mxu0 0.0
        %850 = vmatprep.subr.mxu0 0.0
        %851 = vmatpush1.msra.mxu0 0.0
        %852 = vmatprep.subr.mxu0 0.0
        %853 = vmatpush1.msra.mxu0 0.0
        %854 = vmatprep.subr.mxu0 0.0
        %855 = vmatpush1.msra.mxu0 0.0
        %856 = vmatprep.subr.mxu0 0.0
        %857 = vmatpush1.msra.mxu0 0.0
        %858 = vmatprep.subr.mxu0 0.0
        %859 = vmatpush1.msra.mxu0 0.0
        %860 = vmatprep.subr.mxu0 0.0
        %861 = vmatpush1.msra.mxu0 0.0
        %862 = vmatprep.mubr.f32.mxu0 0.0
        %v863 = vand.u32 %v782, 4294901760
        %v864 = vsub.f32 %v782, %v863
        %v865 = vand.u32 %v864, 4294901760
        %v866 = vsub.f32 %v864, %v865
        %v867 = vand.u32 %v866, 4294901760
        %868 = vmatmul.mubr.f32.gmra.mrb[0].mxu0 %v867
        %v869 = vpop.f32.mrb[0].mxu0
        %v870 = vadd.f32 %v767, %v869
        %v871 = vpop.f32.mrb[0].mxu0
        %872 = vmatprep.mubr.f32.mxu0 0.0
        %v873 = vand.u32 %v784, 4294901760
        %v874 = vsub.f32 %v784, %v873
        %v875 = vand.u32 %v874, 4294901760
        %v876 = vsub.f32 %v874, %v875
        %v877 = vand.u32 %v876, 4294901760
        %878 = vmatmul.mubr.f32.gmra.mrb[0].mxu0 %v877
        %v879 = vpop.f32.mrb[0].mxu0
        %v880 = vadd.f32 %v771, %v879
        %v881 = vpop.f32.mrb[0].mxu0
        %882 = vmatprep.mubr.f32.mxu0 0.0
        %v883 = vand.u32 %v786, 4294901760
        %v884 = vsub.f32 %v786, %v883
        %v885 = vand.u32 %v884, 4294901760
        %v886 = vsub.f32 %v884, %v885
        %v887 = vand.u32 %v886, 4294901760
        %888 = vmatmul.mubr.f32.gmra.mrb[0].mxu0 %v887
        %v889 = vpop.f32.mrb[0].mxu0
        %v890 = vadd.f32 %v775, %v889
        %v891 = vpop.f32.mrb[0].mxu0
        %892 = vmatprep.mubr.f32.mxu0 0.0
        %v893 = vand.u32 %v788, 4294901760
        %v894 = vsub.f32 %v788, %v893
        %v895 = vand.u32 %v894, 4294901760
        %v896 = vsub.f32 %v894, %v895
        %v897 = vand.u32 %v896, 4294901760
        %898 = vmatmul.mubr.f32.gmra.mrb[0].mxu0 %v897
        %v899 = vpop.f32.mrb[0].mxu0
        %v900 = vadd.f32 %v779, %v899
        %v901 = vpop.f32.mrb[0].mxu0
        %902 = vdwg.mxu0
        %903 = vmatprep.subr.mxu0 0.0
        %v904 = vand.u32 %v761, 4294901760
        %v905 = vsub.f32 %v761, %v904
        %v906 = vand.u32 %v905, 4294901760
        %v907 = vsub.f32 %v905, %v906
        %v908 = vand.u32 %v907, 4294901760
        %909 = vmatpush1.msra.mxu0 %v908
        %910 = vmatprep.subr.mxu0 0.0
        %v911 = vand.u32 %v762, 4294901760
        %v912 = vsub.f32 %v762, %v911
        %v913 = vand.u32 %v912, 4294901760
        %v914 = vsub.f32 %v912, %v913
        %v915 = vand.u32 %v914, 4294901760
        %916 = vmatpush1.msra.mxu0 %v915
        %917 = vmatprep.subr.mxu0 0.0
        %v918 = vand.u32 %v763, 4294901760
        %v919 = vsub.f32 %v763, %v918
        %v920 = vand.u32 %v919, 4294901760
        %v921 = vsub.f32 %v919, %v920
        %v922 = vand.u32 %v921, 4294901760
        %923 = vmatpush1.msra.mxu0 %v922
        %924 = vmatprep.subr.mxu0 0.0
        %v925 = vand.u32 %v792, 4294901760
        %v926 = vsub.f32 %v792, %v925
        %v927 = vand.u32 %v926, 4294901760
        %v928 = vsub.f32 %v926, %v927
        %v929 = vand.u32 %v928, 4294901760
        %930 = vmatpush1.msra.mxu0 %v929
        %931 = vmatprep.subr.mxu0 0.0
        %932 = vmatpush1.msra.mxu0 0.0
        %933 = vmatprep.subr.mxu0 0.0
        %934 = vmatpush1.msra.mxu0 0.0
        %935 = vmatprep.subr.mxu0 0.0
        %936 = vmatpush1.msra.mxu0 0.0
        %937 = vmatprep.subr.mxu0 0.0
        %938 = vmatpush1.msra.mxu0 0.0
        %939 = vmatprep.subr.mxu0 0.0
        %940 = vmatpush1.msra.mxu0 0.0
        %941 = vmatprep.subr.mxu0 0.0
        %942 = vmatpush1.msra.mxu0 0.0
        %943 = vmatprep.subr.mxu0 0.0
        %944 = vmatpush1.msra.mxu0 0.0
        %945 = vmatprep.subr.mxu0 0.0
        %946 = vmatpush1.msra.mxu0 0.0
        %947 = vmatprep.subr.mxu0 0.0
        %948 = vmatpush1.msra.mxu0 0.0
        %949 = vmatprep.subr.mxu0 0.0
        %950 = vmatpush1.msra.mxu0 0.0
        %951 = vmatprep.subr.mxu0 0.0
        %952 = vmatpush1.msra.mxu0 0.0
        %953 = vmatprep.subr.mxu0 0.0
        %954 = vmatpush1.msra.mxu0 0.0
        %955 = vmatprep.subr.mxu0 0.0
        %956 = vmatpush1.msra.mxu0 0.0
        %957 = vmatprep.subr.mxu0 0.0
        %958 = vmatpush1.msra.mxu0 0.0
        %959 = vmatprep.subr.mxu0 0.0
        %960 = vmatpush1.msra.mxu0 0.0
        %961 = vmatprep.subr.mxu0 0.0
        %962 = vmatpush1.msra.mxu0 0.0
        %963 = vmatprep.subr.mxu0 0.0
        %964 = vmatpush1.msra.mxu0 0.0
        %965 = vmatprep.subr.mxu0 0.0
        %966 = vmatpush1.msra.mxu0 0.0
        %967 = vmatprep.subr.mxu0 0.0
        %968 = vmatpush1.msra.mxu0 0.0
        %969 = vmatprep.subr.mxu0 0.0
        %970 = vmatpush1.msra.mxu0 0.0
        %971 = vmatprep.subr.mxu0 0.0
        %972 = vmatpush1.msra.mxu0 0.0
        %973 = vmatprep.subr.mxu0 0.0
        %974 = vmatpush1.msra.mxu0 0.0
        %975 = vmatprep.subr.mxu0 0.0
        %976 = vmatpush1.msra.mxu0 0.0
        %977 = vmatprep.subr.mxu0 0.0
        %978 = vmatpush1.msra.mxu0 0.0
        %979 = vmatprep.subr.mxu0 0.0
        %980 = vmatpush1.msra.mxu0 0.0
        %981 = vmatprep.subr.mxu0 0.0
        %982 = vmatpush1.msra.mxu0 0.0
        %983 = vmatprep.subr.mxu0 0.0
        %984 = vmatpush1.msra.mxu0 0.0
        %985 = vmatprep.subr.mxu0 0.0
        %986 = vmatpush1.msra.mxu0 0.0
        %987 = vmatprep.mubr.f32.mxu0 0.0
        %v988 = vand.u32 %v782, 4294901760
        %989 = vmatmul.mubr.f32.gmra.mrb[0].mxu0 %v988
        %v990 = vpop.f32.mrb[0].mxu0
        %v991 = vadd.f32 %v870, %v990
        %v992 = vpop.f32.mrb[0].mxu0
        %993 = vmatprep.mubr.f32.mxu0 0.0
        %v994 = vand.u32 %v784, 4294901760
        %995 = vmatmul.mubr.f32.gmra.mrb[0].mxu0 %v994
        %v996 = vpop.f32.mrb[0].mxu0
        %v997 = vadd.f32 %v880, %v996
        %v998 = vpop.f32.mrb[0].mxu0
        %999 = vmatprep.mubr.f32.mxu0 0.0
        %v1000 = vand.u32 %v786, 4294901760
        %1001 = vmatmul.mubr.f32.gmra.mrb[0].mxu0 %v1000
        %v1002 = vpop.f32.mrb[0].mxu0
        %v1003 = vadd.f32 %v890, %v1002
        %v1004 = vpop.f32.mrb[0].mxu0
        %1005 = vmatprep.mubr.f32.mxu0 0.0
        %v1006 = vand.u32 %v788, 4294901760
        %1007 = vmatmul.mubr.f32.gmra.mrb[0].mxu0 %v1006
        %v1008 = vpop.f32.mrb[0].mxu0
        %v1009 = vadd.f32 %v900, %v1008
        %v1010 = vpop.f32.mrb[0].mxu0
        %1011 = vdwg.mxu0
        %1012 = vmatprep.subr.mxu0 0.0
        %v1013 = vand.u32 %v761, 4294901760
        %v1014 = vsub.f32 %v761, %v1013
        %1015 = vmatpush1.msra.mxu0 %v1014
        %1016 = vmatprep.subr.mxu0 0.0
        %v1017 = vand.u32 %v762, 4294901760
        %v1018 = vsub.f32 %v762, %v1017
        %1019 = vmatpush1.msra.mxu0 %v1018
        %1020 = vmatprep.subr.mxu0 0.0
        %v1021 = vand.u32 %v763, 4294901760
        %v1022 = vsub.f32 %v763, %v1021
        %1023 = vmatpush1.msra.mxu0 %v1022
        %1024 = vmatprep.subr.mxu0 0.0
        %v1025 = vand.u32 %v792, 4294901760
        %v1026 = vsub.f32 %v792, %v1025
        %1027 = vmatpush1.msra.mxu0 %v1026
        %1028 = vmatprep.subr.mxu0 0.0
        %1029 = vmatpush1.msra.mxu0 0.0
        %1030 = vmatprep.subr.mxu0 0.0
        %1031 = vmatpush1.msra.mxu0 0.0
        %1032 = vmatprep.subr.mxu0 0.0
        %1033 = vmatpush1.msra.mxu0 0.0
        %1034 = vmatprep.subr.mxu0 0.0
        %1035 = vmatpush1.msra.mxu0 0.0
        %1036 = vmatprep.subr.mxu0 0.0
        %1037 = vmatpush1.msra.mxu0 0.0
        %1038 = vmatprep.subr.mxu0 0.0
        %1039 = vmatpush1.msra.mxu0 0.0
        %1040 = vmatprep.subr.mxu0 0.0
        %1041 = vmatpush1.msra.mxu0 0.0
        %1042 = vmatprep.subr.mxu0 0.0
        %1043 = vmatpush1.msra.mxu0 0.0
        %1044 = vmatprep.subr.mxu0 0.0
        %1045 = vmatpush1.msra.mxu0 0.0
        %1046 = vmatprep.subr.mxu0 0.0
        %1047 = vmatpush1.msra.mxu0 0.0
        %1048 = vmatprep.subr.mxu0 0.0
        %1049 = vmatpush1.msra.mxu0 0.0
        %1050 = vmatprep.subr.mxu0 0.0
        %1051 = vmatpush1.msra.mxu0 0.0
        %1052 = vmatprep.subr.mxu0 0.0
        %1053 = vmatpush1.msra.mxu0 0.0
        %1054 = vmatprep.subr.mxu0 0.0
        %1055 = vmatpush1.msra.mxu0 0.0
        %1056 = vmatprep.subr.mxu0 0.0
        %1057 = vmatpush1.msra.mxu0 0.0
        %1058 = vmatprep.subr.mxu0 0.0
        %1059 = vmatpush1.msra.mxu0 0.0
        %1060 = vmatprep.subr.mxu0 0.0
        %1061 = vmatpush1.msra.mxu0 0.0
        %1062 = vmatprep.subr.mxu0 0.0
        %1063 = vmatpush1.msra.mxu0 0.0
        %1064 = vmatprep.subr.mxu0 0.0
        %1065 = vmatpush1.msra.mxu0 0.0
        %1066 = vmatprep.subr.mxu0 0.0
        %1067 = vmatpush1.msra.mxu0 0.0
        %1068 = vmatprep.subr.mxu0 0.0
        %1069 = vmatpush1.msra.mxu0 0.0
        %1070 = vmatprep.subr.mxu0 0.0
        %1071 = vmatpush1.msra.mxu0 0.0
        %1072 = vmatprep.subr.mxu0 0.0
        %1073 = vmatpush1.msra.mxu0 0.0
        %1074 = vmatprep.subr.mxu0 0.0
        %1075 = vmatpush1.msra.mxu0 0.0
        %1076 = vmatprep.subr.mxu0 0.0
        %1077 = vmatpush1.msra.mxu0 0.0
        %1078 = vmatprep.subr.mxu0 0.0
        %1079 = vmatpush1.msra.mxu0 0.0
        %1080 = vmatprep.subr.mxu0 0.0
        %1081 = vmatpush1.msra.mxu0 0.0
        %1082 = vmatprep.subr.mxu0 0.0
        %1083 = vmatpush1.msra.mxu0 0.0
        %1084 = vmatprep.mubr.f32.mxu0 0.0
        %v1085 = vand.u32 %v782, 4294901760
        %v1086 = vsub.f32 %v782, %v1085
        %1087 = vmatmul.mubr.f32.gmra.mrb[0].mxu0 %v1086
        %v1088 = vpop.f32.mrb[0].mxu0
        %v1089 = vadd.f32 %v991, %v1088
        %v1090 = vpop.f32.mrb[0].mxu0
        %1091 = vmatprep.mubr.f32.mxu0 0.0
        %v1092 = vand.u32 %v784, 4294901760
        %v1093 = vsub.f32 %v784, %v1092
        %1094 = vmatmul.mubr.f32.gmra.mrb[0].mxu0 %v1093
        %v1095 = vpop.f32.mrb[0].mxu0
        %v1096 = vadd.f32 %v997, %v1095
        %v1097 = vpop.f32.mrb[0].mxu0
        %1098 = vmatprep.mubr.f32.mxu0 0.0
        %v1099 = vand.u32 %v786, 4294901760
        %v1100 = vsub.f32 %v786, %v1099
        %1101 = vmatmul.mubr.f32.gmra.mrb[0].mxu0 %v1100
        %v1102 = vpop.f32.mrb[0].mxu0
        %v1103 = vadd.f32 %v1003, %v1102
        %v1104 = vpop.f32.mrb[0].mxu0
        %1105 = vmatprep.mubr.f32.mxu0 0.0
        %v1106 = vand.u32 %v788, 4294901760
        %v1107 = vsub.f32 %v788, %v1106
        %1108 = vmatmul.mubr.f32.gmra.mrb[0].mxu0 %v1107
        %v1109 = vpop.f32.mrb[0].mxu0
        %v1110 = vadd.f32 %v1009, %v1109
        %v1111 = vpop.f32.mrb[0].mxu0
        %1112 = vdwg.mxu0
        %1113 = vmatprep.subr.mxu0 0.0
        %v1114 = vand.u32 %v761, 4294901760
        %1115 = vmatpush1.msra.mxu0 %v1114
        %1116 = vmatprep.subr.mxu0 0.0
        %v1117 = vand.u32 %v762, 4294901760
        %1118 = vmatpush1.msra.mxu0 %v1117
        %1119 = vmatprep.subr.mxu0 0.0
        %v1120 = vand.u32 %v763, 4294901760
        %1121 = vmatpush1.msra.mxu0 %v1120
        %1122 = vmatprep.subr.mxu0 0.0
        %v1123 = vand.u32 %v792, 4294901760
        %1124 = vmatpush1.msra.mxu0 %v1123
        %1125 = vmatprep.subr.mxu0 0.0
        %1126 = vmatpush1.msra.mxu0 0.0
        %1127 = vmatprep.subr.mxu0 0.0
        %1128 = vmatpush1.msra.mxu0 0.0
        %1129 = vmatprep.subr.mxu0 0.0
        %1130 = vmatpush1.msra.mxu0 0.0
        %1131 = vmatprep.subr.mxu0 0.0
        %1132 = vmatpush1.msra.mxu0 0.0
        %1133 = vmatprep.subr.mxu0 0.0
        %1134 = vmatpush1.msra.mxu0 0.0
        %1135 = vmatprep.subr.mxu0 0.0
        %1136 = vmatpush1.msra.mxu0 0.0
        %1137 = vmatprep.subr.mxu0 0.0
        %1138 = vmatpush1.msra.mxu0 0.0
        %1139 = vmatprep.subr.mxu0 0.0
        %1140 = vmatpush1.msra.mxu0 0.0
        %1141 = vmatprep.subr.mxu0 0.0
        %1142 = vmatpush1.msra.mxu0 0.0
        %1143 = vmatprep.subr.mxu0 0.0
        %1144 = vmatpush1.msra.mxu0 0.0
        %1145 = vmatprep.subr.mxu0 0.0
        %1146 = vmatpush1.msra.mxu0 0.0
        %1147 = vmatprep.subr.mxu0 0.0
        %1148 = vmatpush1.msra.mxu0 0.0
        %1149 = vmatprep.subr.mxu0 0.0
        %1150 = vmatpush1.msra.mxu0 0.0
        %1151 = vmatprep.subr.mxu0 0.0
        %1152 = vmatpush1.msra.mxu0 0.0
        %1153 = vmatprep.subr.mxu0 0.0
        %1154 = vmatpush1.msra.mxu0 0.0
        %1155 = vmatprep.subr.mxu0 0.0
        %1156 = vmatpush1.msra.mxu0 0.0
        %1157 = vmatprep.subr.mxu0 0.0
        %1158 = vmatpush1.msra.mxu0 0.0
        %1159 = vmatprep.subr.mxu0 0.0
        %1160 = vmatpush1.msra.mxu0 0.0
        %1161 = vmatprep.subr.mxu0 0.0
        %1162 = vmatpush1.msra.mxu0 0.0
        %1163 = vmatprep.subr.mxu0 0.0
        %1164 = vmatpush1.msra.mxu0 0.0
        %1165 = vmatprep.subr.mxu0 0.0
        %1166 = vmatpush1.msra.mxu0 0.0
        %1167 = vmatprep.subr.mxu0 0.0
        %1168 = vmatpush1.msra.mxu0 0.0
        %1169 = vmatprep.subr.mxu0 0.0
        %1170 = vmatpush1.msra.mxu0 0.0
        %1171 = vmatprep.subr.mxu0 0.0
        %1172 = vmatpush1.msra.mxu0 0.0
        %1173 = vmatprep.subr.mxu0 0.0
        %1174 = vmatpush1.msra.mxu0 0.0
        %1175 = vmatprep.subr.mxu0 0.0
        %1176 = vmatpush1.msra.mxu0 0.0
        %1177 = vmatprep.subr.mxu0 0.0
        %1178 = vmatpush1.msra.mxu0 0.0
        %1179 = vmatprep.subr.mxu0 0.0
        %1180 = vmatpush1.msra.mxu0 0.0
        %1181 = vmatprep.mubr.f32.mxu0 0.0
        %v1182 = vand.u32 %v782, 4294901760
        %v1183 = vsub.f32 %v782, %v1182
        %v1184 = vand.u32 %v1183, 4294901760
        %1185 = vmatmul.mubr.f32.gmra.mrb[0].mxu0 %v1184
        %v1186 = vpop.f32.mrb[0].mxu0
        %v1187 = vadd.f32 %v1089, %v1186
        %v1188 = vpop.f32.mrb[0].mxu0
        %1189 = vmatprep.mubr.f32.mxu0 0.0
        %v1190 = vand.u32 %v784, 4294901760
        %v1191 = vsub.f32 %v784, %v1190
        %v1192 = vand.u32 %v1191, 4294901760
        %1193 = vmatmul.mubr.f32.gmra.mrb[0].mxu0 %v1192
        %v1194 = vpop.f32.mrb[0].mxu0
        %v1195 = vadd.f32 %v1096, %v1194
        %v1196 = vpop.f32.mrb[0].mxu0
        %1197 = vmatprep.mubr.f32.mxu0 0.0
        %v1198 = vand.u32 %v786, 4294901760
        %v1199 = vsub.f32 %v786, %v1198
        %v1200 = vand.u32 %v1199, 4294901760
        %1201 = vmatmul.mubr.f32.gmra.mrb[0].mxu0 %v1200
        %v1202 = vpop.f32.mrb[0].mxu0
        %v1203 = vadd.f32 %v1103, %v1202
        %v1204 = vpop.f32.mrb[0].mxu0
        %1205 = vmatprep.mubr.f32.mxu0 0.0
        %v1206 = vand.u32 %v788, 4294901760
        %v1207 = vsub.f32 %v788, %v1206
        %v1208 = vand.u32 %v1207, 4294901760
        %1209 = vmatmul.mubr.f32.gmra.mrb[0].mxu0 %v1208
        %v1210 = vpop.f32.mrb[0].mxu0
        %v1211 = vadd.f32 %v1110, %v1210
        %v1212 = vpop.f32.mrb[0].mxu0
        %1213 = vdwg.mxu0
        %1214 = vmatprep.subr.mxu0 0.0
        %v1215 = vand.u32 %v761, 4294901760
        %v1216 = vsub.f32 %v761, %v1215
        %v1217 = vand.u32 %v1216, 4294901760
        %1218 = vmatpush1.msra.mxu0 %v1217
        %1219 = vmatprep.subr.mxu0 0.0
        %v1220 = vand.u32 %v762, 4294901760
        %v1221 = vsub.f32 %v762, %v1220
        %v1222 = vand.u32 %v1221, 4294901760
        %1223 = vmatpush1.msra.mxu0 %v1222
        %1224 = vmatprep.subr.mxu0 0.0
        %v1225 = vand.u32 %v763, 4294901760
        %v1226 = vsub.f32 %v763, %v1225
        %v1227 = vand.u32 %v1226, 4294901760
        %1228 = vmatpush1.msra.mxu0 %v1227
        %1229 = vmatprep.subr.mxu0 0.0
        %v1230 = vand.u32 %v792, 4294901760
        %v1231 = vsub.f32 %v792, %v1230
        %v1232 = vand.u32 %v1231, 4294901760
        %1233 = vmatpush1.msra.mxu0 %v1232
        %1234 = vmatprep.subr.mxu0 0.0
        %1235 = vmatpush1.msra.mxu0 0.0
        %1236 = vmatprep.subr.mxu0 0.0
        %1237 = vmatpush1.msra.mxu0 0.0
        %1238 = vmatprep.subr.mxu0 0.0
        %1239 = vmatpush1.msra.mxu0 0.0
        %1240 = vmatprep.subr.mxu0 0.0
        %1241 = vmatpush1.msra.mxu0 0.0
        %1242 = vmatprep.subr.mxu0 0.0
        %1243 = vmatpush1.msra.mxu0 0.0
        %1244 = vmatprep.subr.mxu0 0.0
        %1245 = vmatpush1.msra.mxu0 0.0
        %1246 = vmatprep.subr.mxu0 0.0
        %1247 = vmatpush1.msra.mxu0 0.0
        %1248 = vmatprep.subr.mxu0 0.0
        %1249 = vmatpush1.msra.mxu0 0.0
        %1250 = vmatprep.subr.mxu0 0.0
        %1251 = vmatpush1.msra.mxu0 0.0
        %1252 = vmatprep.subr.mxu0 0.0
        %1253 = vmatpush1.msra.mxu0 0.0
        %1254 = vmatprep.subr.mxu0 0.0
        %1255 = vmatpush1.msra.mxu0 0.0
        %1256 = vmatprep.subr.mxu0 0.0
        %1257 = vmatpush1.msra.mxu0 0.0
        %1258 = vmatprep.subr.mxu0 0.0
        %1259 = vmatpush1.msra.mxu0 0.0
        %1260 = vmatprep.subr.mxu0 0.0
        %1261 = vmatpush1.msra.mxu0 0.0
        %1262 = vmatprep.subr.mxu0 0.0
        %1263 = vmatpush1.msra.mxu0 0.0
        %1264 = vmatprep.subr.mxu0 0.0
        %1265 = vmatpush1.msra.mxu0 0.0
        %1266 = vmatprep.subr.mxu0 0.0
        %1267 = vmatpush1.msra.mxu0 0.0
        %1268 = vmatprep.subr.mxu0 0.0
        %1269 = vmatpush1.msra.mxu0 0.0
        %1270 = vmatprep.subr.mxu0 0.0
        %1271 = vmatpush1.msra.mxu0 0.0
        %1272 = vmatprep.subr.mxu0 0.0
        %1273 = vmatpush1.msra.mxu0 0.0
        %1274 = vmatprep.subr.mxu0 0.0
        %1275 = vmatpush1.msra.mxu0 0.0
        %1276 = vmatprep.subr.mxu0 0.0
        %1277 = vmatpush1.msra.mxu0 0.0
        %1278 = vmatprep.subr.mxu0 0.0
        %1279 = vmatpush1.msra.mxu0 0.0
        %1280 = vmatprep.subr.mxu0 0.0
        %1281 = vmatpush1.msra.mxu0 0.0
        %1282 = vmatprep.subr.mxu0 0.0
        %1283 = vmatpush1.msra.mxu0 0.0
        %1284 = vmatprep.subr.mxu0 0.0
        %1285 = vmatpush1.msra.mxu0 0.0
        %1286 = vmatprep.subr.mxu0 0.0
        %1287 = vmatpush1.msra.mxu0 0.0
        %1288 = vmatprep.subr.mxu0 0.0
        %1289 = vmatpush1.msra.mxu0 0.0
        %1290 = vmatprep.mubr.f32.mxu0 0.0
        %v1291 = vand.u32 %v782, 4294901760
        %1292 = vmatmul.mubr.f32.gmra.mrb[0].mxu0 %v1291
        %v1293 = vpop.f32.mrb[0].mxu0
        %v1294 = vadd.f32 %v1187, %v1293
        %v1295 = vpop.f32.mrb[0].mxu0
        %1296 = vmatprep.mubr.f32.mxu0 0.0
        %v1297 = vand.u32 %v784, 4294901760
        %1298 = vmatmul.mubr.f32.gmra.mrb[0].mxu0 %v1297
        %v1299 = vpop.f32.mrb[0].mxu0
        %v1300 = vadd.f32 %v1195, %v1299
        %v1301 = vpop.f32.mrb[0].mxu0
        %1302 = vmatprep.mubr.f32.mxu0 0.0
        %v1303 = vand.u32 %v786, 4294901760
        %1304 = vmatmul.mubr.f32.gmra.mrb[0].mxu0 %v1303
        %v1305 = vpop.f32.mrb[0].mxu0
        %v1306 = vadd.f32 %v1203, %v1305
        %v1307 = vpop.f32.mrb[0].mxu0
        %1308 = vmatprep.mubr.f32.mxu0 0.0
        %v1309 = vand.u32 %v788, 4294901760
        %1310 = vmatmul.mubr.f32.gmra.mrb[0].mxu0 %v1309
        %v1311 = vpop.f32.mrb[0].mxu0
        %v1312 = vadd.f32 %v1211, %v1311
        %v1313 = vpop.f32.mrb[0].mxu0
        %1314 = vdwg.mxu0
        %1315 = vmatprep.subr.mxu0 0.0
        %v1316 = vand.u32 %v761, 4294901760
        %1317 = vmatpush1.msra.mxu0 %v1316
        %1318 = vmatprep.subr.mxu0 0.0
        %v1319 = vand.u32 %v762, 4294901760
        %1320 = vmatpush1.msra.mxu0 %v1319
        %1321 = vmatprep.subr.mxu0 0.0
        %v1322 = vand.u32 %v763, 4294901760
        %1323 = vmatpush1.msra.mxu0 %v1322
        %1324 = vmatprep.subr.mxu0 0.0
        %v1325 = vand.u32 %v792, 4294901760
        %1326 = vmatpush1.msra.mxu0 %v1325
        %1327 = vmatprep.subr.mxu0 0.0
        %1328 = vmatpush1.msra.mxu0 0.0
        %1329 = vmatprep.subr.mxu0 0.0
        %1330 = vmatpush1.msra.mxu0 0.0
        %1331 = vmatprep.subr.mxu0 0.0
        %1332 = vmatpush1.msra.mxu0 0.0
        %1333 = vmatprep.subr.mxu0 0.0
        %1334 = vmatpush1.msra.mxu0 0.0
        %1335 = vmatprep.subr.mxu0 0.0
        %1336 = vmatpush1.msra.mxu0 0.0
        %1337 = vmatprep.subr.mxu0 0.0
        %1338 = vmatpush1.msra.mxu0 0.0
        %1339 = vmatprep.subr.mxu0 0.0
        %1340 = vmatpush1.msra.mxu0 0.0
        %1341 = vmatprep.subr.mxu0 0.0
        %1342 = vmatpush1.msra.mxu0 0.0
        %1343 = vmatprep.subr.mxu0 0.0
        %1344 = vmatpush1.msra.mxu0 0.0
        %1345 = vmatprep.subr.mxu0 0.0
        %1346 = vmatpush1.msra.mxu0 0.0
        %1347 = vmatprep.subr.mxu0 0.0
        %1348 = vmatpush1.msra.mxu0 0.0
        %1349 = vmatprep.subr.mxu0 0.0
        %1350 = vmatpush1.msra.mxu0 0.0
        %1351 = vmatprep.subr.mxu0 0.0
        %1352 = vmatpush1.msra.mxu0 0.0
        %1353 = vmatprep.subr.mxu0 0.0
        %1354 = vmatpush1.msra.mxu0 0.0
        %1355 = vmatprep.subr.mxu0 0.0
        %1356 = vmatpush1.msra.mxu0 0.0
        %1357 = vmatprep.subr.mxu0 0.0
        %1358 = vmatpush1.msra.mxu0 0.0
        %1359 = vmatprep.subr.mxu0 0.0
        %1360 = vmatpush1.msra.mxu0 0.0
        %1361 = vmatprep.subr.mxu0 0.0
        %1362 = vmatpush1.msra.mxu0 0.0
        %1363 = vmatprep.subr.mxu0 0.0
        %1364 = vmatpush1.msra.mxu0 0.0
        %1365 = vmatprep.subr.mxu0 0.0
        %1366 = vmatpush1.msra.mxu0 0.0
        %1367 = vmatprep.subr.mxu0 0.0
        %1368 = vmatpush1.msra.mxu0 0.0
        %1369 = vmatprep.subr.mxu0 0.0
        %1370 = vmatpush1.msra.mxu0 0.0
        %1371 = vmatprep.subr.mxu0 0.0
        %1372 = vmatpush1.msra.mxu0 0.0
        %1373 = vmatprep.subr.mxu0 0.0
        %1374 = vmatpush1.msra.mxu0 0.0
        %1375 = vmatprep.subr.mxu0 0.0
        %1376 = vmatpush1.msra.mxu0 0.0
        %1377 = vmatprep.subr.mxu0 0.0
        %1378 = vmatpush1.msra.mxu0 0.0
        %1379 = vmatprep.subr.mxu0 0.0
        %1380 = vmatpush1.msra.mxu0 0.0
        %1381 = vmatprep.subr.mxu0 0.0
        %1382 = vmatpush1.msra.mxu0 0.0
        %1383 = vmatprep.mubr.f32.mxu0 0.0
        %v1384 = vand.u32 %v782, 4294901760
        %1385 = vmatmul.mubr.f32.gmra.mrb[0].mxu0 %v1384
        %v1386 = vpop.f32.mrb[0].mxu0
        %v1387 = vadd.f32 %v1294, %v1386
        %v1388 = vpop.f32.mrb[0].mxu0
        %1389 = vmatprep.mubr.f32.mxu0 0.0
        %v1390 = vand.u32 %v784, 4294901760
        %1391 = vmatmul.mubr.f32.gmra.mrb[0].mxu0 %v1390
        %v1392 = vpop.f32.mrb[0].mxu0
        %v1393 = vadd.f32 %v1300, %v1392
        %v1394 = vpop.f32.mrb[0].mxu0
        %1395 = vmatprep.mubr.f32.mxu0 0.0
        %v1396 = vand.u32 %v786, 4294901760
        %1397 = vmatmul.mubr.f32.gmra.mrb[0].mxu0 %v1396
        %v1398 = vpop.f32.mrb[0].mxu0
        %v1399 = vadd.f32 %v1306, %v1398
        %v1400 = vpop.f32.mrb[0].mxu0
        %1401 = vmatprep.mubr.f32.mxu0 0.0
        %v1402 = vand.u32 %v788, 4294901760
        %1403 = vmatmul.mubr.f32.gmra.mrb[0].mxu0 %v1402
        %v1404 = vpop.f32.mrb[0].mxu0
        %v1405 = vadd.f32 %v1312, %v1404
        %v1406 = vpop.f32.mrb[0].mxu0
        %1407 = vdwg.mxu0
        %v1408 = vmax.f32 %v1387, 0.0
        %v1409 = vmax.f32 %v1393, 0.0
        %v1410 = vmax.f32 %v1399, 0.0
        %v1411 = vmax.f32 %v1405, 0.0
        %1413 = vset.pattern.permute.xlu0 34
        %1414 = vperm.xlu0 %1413, %v144
        %v1415 = vpop.permute.xlu0 %1414
        %v1417 = vsel %vm781, %v144, 0
        %v1420 = vsel %vm790, %v1411, 0
        %1422 = vmatprep.subr.mxu0 0.0
        %v1423 = vand.u32 %v1408, 4294901760
        %1424 = vmatpush1.msra.mxu0 %v1423
        %1425 = vmatprep.subr.mxu0 0.0
        %v1426 = vand.u32 %v1409, 4294901760
        %1427 = vmatpush1.msra.mxu0 %v1426
        %1428 = vmatprep.subr.mxu0 0.0
        %v1429 = vand.u32 %v1410, 4294901760
        %1430 = vmatpush1.msra.mxu0 %v1429
        %1431 = vmatprep.subr.mxu0 0.0
        %v1432 = vand.u32 %v1420, 4294901760
        %1433 = vmatpush1.msra.mxu0 %v1432
        %1434 = vmatprep.subr.mxu0 0.0
        %1435 = vmatpush1.msra.mxu0 0.0
        %1436 = vmatprep.subr.mxu0 0.0
        %1437 = vmatpush1.msra.mxu0 0.0
        %1438 = vmatprep.subr.mxu0 0.0
        %1439 = vmatpush1.msra.mxu0 0.0
        %1440 = vmatprep.subr.mxu0 0.0
        %1441 = vmatpush1.msra.mxu0 0.0
        %1442 = vmatprep.subr.mxu0 0.0
        %1443 = vmatpush1.msra.mxu0 0.0
        %1444 = vmatprep.subr.mxu0 0.0
        %1445 = vmatpush1.msra.mxu0 0.0
        %1446 = vmatprep.subr.mxu0 0.0
        %1447 = vmatpush1.msra.mxu0 0.0
        %1448 = vmatprep.subr.mxu0 0.0
        %1449 = vmatpush1.msra.mxu0 0.0
        %1450 = vmatprep.subr.mxu0 0.0
        %1451 = vmatpush1.msra.mxu0 0.0
        %1452 = vmatprep.subr.mxu0 0.0
        %1453 = vmatpush1.msra.mxu0 0.0
        %1454 = vmatprep.subr.mxu0 0.0
        %1455 = vmatpush1.msra.mxu0 0.0
        %1456 = vmatprep.subr.mxu0 0.0
        %1457 = vmatpush1.msra.mxu0 0.0
        %1458 = vmatprep.subr.mxu0 0.0
        %1459 = vmatpush1.msra.mxu0 0.0
        %1460 = vmatprep.subr.mxu0 0.0
        %1461 = vmatpush1.msra.mxu0 0.0
        %1462 = vmatprep.subr.mxu0 0.0
        %1463 = vmatpush1.msra.mxu0 0.0
        %1464 = vmatprep.subr.mxu0 0.0
        %1465 = vmatpush1.msra.mxu0 0.0
        %1466 = vmatprep.subr.mxu0 0.0
        %1467 = vmatpush1.msra.mxu0 0.0
        %1468 = vmatprep.subr.mxu0 0.0
        %1469 = vmatpush1.msra.mxu0 0.0
        %1470 = vmatprep.subr.mxu0 0.0
        %1471 = vmatpush1.msra.mxu0 0.0
        %1472 = vmatprep.subr.mxu0 0.0
        %1473 = vmatpush1.msra.mxu0 0.0
        %1474 = vmatprep.subr.mxu0 0.0
        %1475 = vmatpush1.msra.mxu0 0.0
        %1476 = vmatprep.subr.mxu0 0.0
        %1477 = vmatpush1.msra.mxu0 0.0
        %1478 = vmatprep.subr.mxu0 0.0
        %1479 = vmatpush1.msra.mxu0 0.0
        %1480 = vmatprep.subr.mxu0 0.0
        %1481 = vmatpush1.msra.mxu0 0.0
        %1482 = vmatprep.subr.mxu0 0.0
        %1483 = vmatpush1.msra.mxu0 0.0
        %1484 = vmatprep.subr.mxu0 0.0
        %1485 = vmatpush1.msra.mxu0 0.0
        %1486 = vmatprep.subr.mxu0 0.0
        %1487 = vmatpush1.msra.mxu0 0.0
        %1488 = vmatprep.subr.mxu0 0.0
        %1489 = vmatpush1.msra.mxu0 0.0
        %1490 = vmatprep.mubr.f32.mxu0 0.0
        %v1491 = vand.u32 %v1417, 4294901760
        %v1492 = vsub.f32 %v1417, %v1491
        %v1493 = vand.u32 %v1492, 4294901760
        %v1494 = vsub.f32 %v1492, %v1493
        %v1495 = vand.u32 %v1494, 4294901760
        %1496 = vmatmul.mubr.f32.gmra.mrb[0].mxu0 %v1495
        %v1497 = vpop.f32.mrb[0].mxu0
        %v1498 = vadd.f32 %v1415, %v1497
        %v1499 = vpop.f32.mrb[0].mxu0
        %1500 = vdwg.mxu0
        %1501 = vmatprep.subr.mxu0 0.0
        %v1502 = vand.u32 %v1408, 4294901760
        %v1503 = vsub.f32 %v1408, %v1502
        %v1504 = vand.u32 %v1503, 4294901760
        %v1505 = vsub.f32 %v1503, %v1504
        %v1506 = vand.u32 %v1505, 4294901760
        %1507 = vmatpush1.msra.mxu0 %v1506
        %1508 = vmatprep.subr.mxu0 0.0
        %v1509 = vand.u32 %v1409, 4294901760
        %v1510 = vsub.f32 %v1409, %v1509
        %v1511 = vand.u32 %v1510, 4294901760
        %v1512 = vsub.f32 %v1510, %v1511
        %v1513 = vand.u32 %v1512, 4294901760
        %1514 = vmatpush1.msra.mxu0 %v1513
        %1515 = vmatprep.subr.mxu0 0.0
        %v1516 = vand.u32 %v1410, 4294901760
        %v1517 = vsub.f32 %v1410, %v1516
        %v1518 = vand.u32 %v1517, 4294901760
        %v1519 = vsub.f32 %v1517, %v1518
        %v1520 = vand.u32 %v1519, 4294901760
        %1521 = vmatpush1.msra.mxu0 %v1520
        %1522 = vmatprep.subr.mxu0 0.0
        %v1523 = vand.u32 %v1420, 4294901760
        %v1524 = vsub.f32 %v1420, %v1523
        %v1525 = vand.u32 %v1524, 4294901760
        %v1526 = vsub.f32 %v1524, %v1525
        %v1527 = vand.u32 %v1526, 4294901760
        %1528 = vmatpush1.msra.mxu0 %v1527
        %1529 = vmatprep.subr.mxu0 0.0
        %1530 = vmatpush1.msra.mxu0 0.0
        %1531 = vmatprep.subr.mxu0 0.0
        %1532 = vmatpush1.msra.mxu0 0.0
        %1533 = vmatprep.subr.mxu0 0.0
        %1534 = vmatpush1.msra.mxu0 0.0
        %1535 = vmatprep.subr.mxu0 0.0
        %1536 = vmatpush1.msra.mxu0 0.0
        %1537 = vmatprep.subr.mxu0 0.0
        %1538 = vmatpush1.msra.mxu0 0.0
        %1539 = vmatprep.subr.mxu0 0.0
        %1540 = vmatpush1.msra.mxu0 0.0
        %1541 = vmatprep.subr.mxu0 0.0
        %1542 = vmatpush1.msra.mxu0 0.0
        %1543 = vmatprep.subr.mxu0 0.0
        %1544 = vmatpush1.msra.mxu0 0.0
        %1545 = vmatprep.subr.mxu0 0.0
        %1546 = vmatpush1.msra.mxu0 0.0
        %1547 = vmatprep.subr.mxu0 0.0
        %1548 = vmatpush1.msra.mxu0 0.0
        %1549 = vmatprep.subr.mxu0 0.0
        %1550 = vmatpush1.msra.mxu0 0.0
        %1551 = vmatprep.subr.mxu0 0.0
        %1552 = vmatpush1.msra.mxu0 0.0
        %1553 = vmatprep.subr.mxu0 0.0
        %1554 = vmatpush1.msra.mxu0 0.0
        %1555 = vmatprep.subr.mxu0 0.0
        %1556 = vmatpush1.msra.mxu0 0.0
        %1557 = vmatprep.subr.mxu0 0.0
        %1558 = vmatpush1.msra.mxu0 0.0
        %1559 = vmatprep.subr.mxu0 0.0
        %1560 = vmatpush1.msra.mxu0 0.0
        %1561 = vmatprep.subr.mxu0 0.0
        %1562 = vmatpush1.msra.mxu0 0.0
        %1563 = vmatprep.subr.mxu0 0.0
        %1564 = vmatpush1.msra.mxu0 0.0
        %1565 = vmatprep.subr.mxu0 0.0
        %1566 = vmatpush1.msra.mxu0 0.0
        %1567 = vmatprep.subr.mxu0 0.0
        %1568 = vmatpush1.msra.mxu0 0.0
        %1569 = vmatprep.subr.mxu0 0.0
        %1570 = vmatpush1.msra.mxu0 0.0
        %1571 = vmatprep.subr.mxu0 0.0
        %1572 = vmatpush1.msra.mxu0 0.0
        %1573 = vmatprep.subr.mxu0 0.0
        %1574 = vmatpush1.msra.mxu0 0.0
        %1575 = vmatprep.subr.mxu0 0.0
        %1576 = vmatpush1.msra.mxu0 0.0
        %1577 = vmatprep.subr.mxu0 0.0
        %1578 = vmatpush1.msra.mxu0 0.0
        %1579 = vmatprep.subr.mxu0 0.0
        %1580 = vmatpush1.msra.mxu0 0.0
        %1581 = vmatprep.subr.mxu0 0.0
        %1582 = vmatpush1.msra.mxu0 0.0
        %1583 = vmatprep.subr.mxu0 0.0
        %1584 = vmatpush1.msra.mxu0 0.0
        %1585 = vmatprep.mubr.f32.mxu0 0.0
        %v1586 = vand.u32 %v1417, 4294901760
        %1587 = vmatmul.mubr.f32.gmra.mrb[0].mxu0 %v1586
        %v1588 = vpop.f32.mrb[0].mxu0
        %v1589 = vadd.f32 %v1498, %v1588
        %v1590 = vpop.f32.mrb[0].mxu0
        %1591 = vdwg.mxu0
        %1592 = vmatprep.subr.mxu0 0.0
        %v1593 = vand.u32 %v1408, 4294901760
        %v1594 = vsub.f32 %v1408, %v1593
        %1595 = vmatpush1.msra.mxu0 %v1594
        %1596 = vmatprep.subr.mxu0 0.0
        %v1597 = vand.u32 %v1409, 4294901760
        %v1598 = vsub.f32 %v1409, %v1597
        %1599 = vmatpush1.msra.mxu0 %v1598
        %1600 = vmatprep.subr.mxu0 0.0
        %v1601 = vand.u32 %v1410, 4294901760
        %v1602 = vsub.f32 %v1410, %v1601
        %1603 = vmatpush1.msra.mxu0 %v1602
        %1604 = vmatprep.subr.mxu0 0.0
        %v1605 = vand.u32 %v1420, 4294901760
        %v1606 = vsub.f32 %v1420, %v1605
        %1607 = vmatpush1.msra.mxu0 %v1606
        %1608 = vmatprep.subr.mxu0 0.0
        %1609 = vmatpush1.msra.mxu0 0.0
        %1610 = vmatprep.subr.mxu0 0.0
        %1611 = vmatpush1.msra.mxu0 0.0
        %1612 = vmatprep.subr.mxu0 0.0
        %1613 = vmatpush1.msra.mxu0 0.0
        %1614 = vmatprep.subr.mxu0 0.0
        %1615 = vmatpush1.msra.mxu0 0.0
        %1616 = vmatprep.subr.mxu0 0.0
        %1617 = vmatpush1.msra.mxu0 0.0
        %1618 = vmatprep.subr.mxu0 0.0
        %1619 = vmatpush1.msra.mxu0 0.0
        %1620 = vmatprep.subr.mxu0 0.0
        %1621 = vmatpush1.msra.mxu0 0.0
        %1622 = vmatprep.subr.mxu0 0.0
        %1623 = vmatpush1.msra.mxu0 0.0
        %1624 = vmatprep.subr.mxu0 0.0
        %1625 = vmatpush1.msra.mxu0 0.0
        %1626 = vmatprep.subr.mxu0 0.0
        %1627 = vmatpush1.msra.mxu0 0.0
        %1628 = vmatprep.subr.mxu0 0.0
        %1629 = vmatpush1.msra.mxu0 0.0
        %1630 = vmatprep.subr.mxu0 0.0
        %1631 = vmatpush1.msra.mxu0 0.0
        %1632 = vmatprep.subr.mxu0 0.0
        %1633 = vmatpush1.msra.mxu0 0.0
        %1634 = vmatprep.subr.mxu0 0.0
        %1635 = vmatpush1.msra.mxu0 0.0
        %1636 = vmatprep.subr.mxu0 0.0
        %1637 = vmatpush1.msra.mxu0 0.0
        %1638 = vmatprep.subr.mxu0 0.0
        %1639 = vmatpush1.msra.mxu0 0.0
        %1640 = vmatprep.subr.mxu0 0.0
        %1641 = vmatpush1.msra.mxu0 0.0
        %1642 = vmatprep.subr.mxu0 0.0
        %1643 = vmatpush1.msra.mxu0 0.0
        %1644 = vmatprep.subr.mxu0 0.0
        %1645 = vmatpush1.msra.mxu0 0.0
        %1646 = vmatprep.subr.mxu0 0.0
        %1647 = vmatpush1.msra.mxu0 0.0
        %1648 = vmatprep.subr.mxu0 0.0
        %1649 = vmatpush1.msra.mxu0 0.0
        %1650 = vmatprep.subr.mxu0 0.0
        %1651 = vmatpush1.msra.mxu0 0.0
        %1652 = vmatprep.subr.mxu0 0.0
        %1653 = vmatpush1.msra.mxu0 0.0
        %1654 = vmatprep.subr.mxu0 0.0
        %1655 = vmatpush1.msra.mxu0 0.0
        %1656 = vmatprep.subr.mxu0 0.0
        %1657 = vmatpush1.msra.mxu0 0.0
        %1658 = vmatprep.subr.mxu0 0.0
        %1659 = vmatpush1.msra.mxu0 0.0
        %1660 = vmatprep.subr.mxu0 0.0
        %1661 = vmatpush1.msra.mxu0 0.0
        %1662 = vmatprep.subr.mxu0 0.0
        %1663 = vmatpush1.msra.mxu0 0.0
        %1664 = vmatprep.mubr.f32.mxu0 0.0
        %v1665 = vand.u32 %v1417, 4294901760
        %v1666 = vsub.f32 %v1417, %v1665
        %1667 = vmatmul.mubr.f32.gmra.mrb[0].mxu0 %v1666
        %v1668 = vpop.f32.mrb[0].mxu0
        %v1669 = vadd.f32 %v1589, %v1668
        %v1670 = vpop.f32.mrb[0].mxu0
        %1671 = vdwg.mxu0
        %1672 = vmatprep.subr.mxu0 0.0
        %v1673 = vand.u32 %v1408, 4294901760
        %1674 = vmatpush1.msra.mxu0 %v1673
        %1675 = vmatprep.subr.mxu0 0.0
        %v1676 = vand.u32 %v1409, 4294901760
        %1677 = vmatpush1.msra.mxu0 %v1676
        %1678 = vmatprep.subr.mxu0 0.0
        %v1679 = vand.u32 %v1410, 4294901760
        %1680 = vmatpush1.msra.mxu0 %v1679
        %1681 = vmatprep.subr.mxu0 0.0
        %v1682 = vand.u32 %v1420, 4294901760
        %1683 = vmatpush1.msra.mxu0 %v1682
        %1684 = vmatprep.subr.mxu0 0.0
        %1685 = vmatpush1.msra.mxu0 0.0
        %1686 = vmatprep.subr.mxu0 0.0
        %1687 = vmatpush1.msra.mxu0 0.0
        %1688 = vmatprep.subr.mxu0 0.0
        %1689 = vmatpush1.msra.mxu0 0.0
        %1690 = vmatprep.subr.mxu0 0.0
        %1691 = vmatpush1.msra.mxu0 0.0
        %1692 = vmatprep.subr.mxu0 0.0
        %1693 = vmatpush1.msra.mxu0 0.0
        %1694 = vmatprep.subr.mxu0 0.0
        %1695 = vmatpush1.msra.mxu0 0.0
        %1696 = vmatprep.subr.mxu0 0.0
        %1697 = vmatpush1.msra.mxu0 0.0
        %1698 = vmatprep.subr.mxu0 0.0
        %1699 = vmatpush1.msra.mxu0 0.0
        %1700 = vmatprep.subr.mxu0 0.0
        %1701 = vmatpush1.msra.mxu0 0.0
        %1702 = vmatprep.subr.mxu0 0.0
        %1703 = vmatpush1.msra.mxu0 0.0
        %1704 = vmatprep.subr.mxu0 0.0
        %1705 = vmatpush1.msra.mxu0 0.0
        %1706 = vmatprep.subr.mxu0 0.0
        %1707 = vmatpush1.msra.mxu0 0.0
        %1708 = vmatprep.subr.mxu0 0.0
        %1709 = vmatpush1.msra.mxu0 0.0
        %1710 = vmatprep.subr.mxu0 0.0
        %1711 = vmatpush1.msra.mxu0 0.0
        %1712 = vmatprep.subr.mxu0 0.0
        %1713 = vmatpush1.msra.mxu0 0.0
        %1714 = vmatprep.subr.mxu0 0.0
        %1715 = vmatpush1.msra.mxu0 0.0
        %1716 = vmatprep.subr.mxu0 0.0
        %1717 = vmatpush1.msra.mxu0 0.0
        %1718 = vmatprep.subr.mxu0 0.0
        %1719 = vmatpush1.msra.mxu0 0.0
        %1720 = vmatprep.subr.mxu0 0.0
        %1721 = vmatpush1.msra.mxu0 0.0
        %1722 = vmatprep.subr.mxu0 0.0
        %1723 = vmatpush1.msra.mxu0 0.0
        %1724 = vmatprep.subr.mxu0 0.0
        %1725 = vmatpush1.msra.mxu0 0.0
        %1726 = vmatprep.subr.mxu0 0.0
        %1727 = vmatpush1.msra.mxu0 0.0
        %1728 = vmatprep.subr.mxu0 0.0
        %1729 = vmatpush1.msra.mxu0 0.0
        %1730 = vmatprep.subr.mxu0 0.0
        %1731 = vmatpush1.msra.mxu0 0.0
        %1732 = vmatprep.subr.mxu0 0.0
        %1733 = vmatpush1.msra.mxu0 0.0
        %1734 = vmatprep.subr.mxu0 0.0
        %1735 = vmatpush1.msra.mxu0 0.0
        %1736 = vmatprep.subr.mxu0 0.0
        %1737 = vmatpush1.msra.mxu0 0.0
        %1738 = vmatprep.subr.mxu0 0.0
        %1739 = vmatpush1.msra.mxu0 0.0
        %1740 = vmatprep.mubr.f32.mxu0 0.0
        %v1741 = vand.u32 %v1417, 4294901760
        %v1742 = vsub.f32 %v1417, %v1741
        %v1743 = vand.u32 %v1742, 4294901760
        %1744 = vmatmul.mubr.f32.gmra.mrb[0].mxu0 %v1743
        %v1745 = vpop.f32.mrb[0].mxu0
        %v1746 = vadd.f32 %v1669, %v1745
        %v1747 = vpop.f32.mrb[0].mxu0
        %1748 = vdwg.mxu0
        %1749 = vmatprep.subr.mxu0 0.0
        %v1750 = vand.u32 %v1408, 4294901760
        %v1751 = vsub.f32 %v1408, %v1750
        %v1752 = vand.u32 %v1751, 4294901760
        %1753 = vmatpush1.msra.mxu0 %v1752
        %1754 = vmatprep.subr.mxu0 0.0
        %v1755 = vand.u32 %v1409, 4294901760
        %v1756 = vsub.f32 %v1409, %v1755
        %v1757 = vand.u32 %v1756, 4294901760
        %1758 = vmatpush1.msra.mxu0 %v1757
        %1759 = vmatprep.subr.mxu0 0.0
        %v1760 = vand.u32 %v1410, 4294901760
        %v1761 = vsub.f32 %v1410, %v1760
        %v1762 = vand.u32 %v1761, 4294901760
        %1763 = vmatpush1.msra.mxu0 %v1762
        %1764 = vmatprep.subr.mxu0 0.0
        %v1765 = vand.u32 %v1420, 4294901760
        %v1766 = vsub.f32 %v1420, %v1765
        %v1767 = vand.u32 %v1766, 4294901760
        %1768 = vmatpush1.msra.mxu0 %v1767
        %1769 = vmatprep.subr.mxu0 0.0
        %1770 = vmatpush1.msra.mxu0 0.0
        %1771 = vmatprep.subr.mxu0 0.0
        %1772 = vmatpush1.msra.mxu0 0.0
        %1773 = vmatprep.subr.mxu0 0.0
        %1774 = vmatpush1.msra.mxu0 0.0
        %1775 = vmatprep.subr.mxu0 0.0
        %1776 = vmatpush1.msra.mxu0 0.0
        %1777 = vmatprep.subr.mxu0 0.0
        %1778 = vmatpush1.msra.mxu0 0.0
        %1779 = vmatprep.subr.mxu0 0.0
        %1780 = vmatpush1.msra.mxu0 0.0
        %1781 = vmatprep.subr.mxu0 0.0
        %1782 = vmatpush1.msra.mxu0 0.0
        %1783 = vmatprep.subr.mxu0 0.0
        %1784 = vmatpush1.msra.mxu0 0.0
        %1785 = vmatprep.subr.mxu0 0.0
        %1786 = vmatpush1.msra.mxu0 0.0
        %1787 = vmatprep.subr.mxu0 0.0
        %1788 = vmatpush1.msra.mxu0 0.0
        %1789 = vmatprep.subr.mxu0 0.0
        %1790 = vmatpush1.msra.mxu0 0.0
        %1791 = vmatprep.subr.mxu0 0.0
        %1792 = vmatpush1.msra.mxu0 0.0
        %1793 = vmatprep.subr.mxu0 0.0
        %1794 = vmatpush1.msra.mxu0 0.0
        %1795 = vmatprep.subr.mxu0 0.0
        %1796 = vmatpush1.msra.mxu0 0.0
        %1797 = vmatprep.subr.mxu0 0.0
        %1798 = vmatpush1.msra.mxu0 0.0
        %1799 = vmatprep.subr.mxu0 0.0
        %1800 = vmatpush1.msra.mxu0 0.0
        %1801 = vmatprep.subr.mxu0 0.0
        %1802 = vmatpush1.msra.mxu0 0.0
        %1803 = vmatprep.subr.mxu0 0.0
        %1804 = vmatpush1.msra.mxu0 0.0
        %1805 = vmatprep.subr.mxu0 0.0
        %1806 = vmatpush1.msra.mxu0 0.0
        %1807 = vmatprep.subr.mxu0 0.0
        %1808 = vmatpush1.msra.mxu0 0.0
        %1809 = vmatprep.subr.mxu0 0.0
        %1810 = vmatpush1.msra.mxu0 0.0
        %1811 = vmatprep.subr.mxu0 0.0
        %1812 = vmatpush1.msra.mxu0 0.0
        %1813 = vmatprep.subr.mxu0 0.0
        %1814 = vmatpush1.msra.mxu0 0.0
        %1815 = vmatprep.subr.mxu0 0.0
        %1816 = vmatpush1.msra.mxu0 0.0
        %1817 = vmatprep.subr.mxu0 0.0
        %1818 = vmatpush1.msra.mxu0 0.0
        %1819 = vmatprep.subr.mxu0 0.0
        %1820 = vmatpush1.msra.mxu0 0.0
        %1821 = vmatprep.subr.mxu0 0.0
        %1822 = vmatpush1.msra.mxu0 0.0
        %1823 = vmatprep.subr.mxu0 0.0
        %1824 = vmatpush1.msra.mxu0 0.0
        %1825 = vmatprep.mubr.f32.mxu0 0.0
        %v1826 = vand.u32 %v1417, 4294901760
        %1827 = vmatmul.mubr.f32.gmra.mrb[0].mxu0 %v1826
        %v1828 = vpop.f32.mrb[0].mxu0
        %v1829 = vadd.f32 %v1746, %v1828
        %v1830 = vpop.f32.mrb[0].mxu0
        %1831 = vdwg.mxu0
        %1832 = vmatprep.subr.mxu0 0.0
        %v1833 = vand.u32 %v1408, 4294901760
        %1834 = vmatpush1.msra.mxu0 %v1833
        %1835 = vmatprep.subr.mxu0 0.0
        %v1836 = vand.u32 %v1409, 4294901760
        %1837 = vmatpush1.msra.mxu0 %v1836
        %1838 = vmatprep.subr.mxu0 0.0
        %v1839 = vand.u32 %v1410, 4294901760
        %1840 = vmatpush1.msra.mxu0 %v1839
        %1841 = vmatprep.subr.mxu0 0.0
        %v1842 = vand.u32 %v1420, 4294901760
        %1843 = vmatpush1.msra.mxu0 %v1842
        %1844 = vmatprep.subr.mxu0 0.0
        %1845 = vmatpush1.msra.mxu0 0.0
        %1846 = vmatprep.subr.mxu0 0.0
        %1847 = vmatpush1.msra.mxu0 0.0
        %1848 = vmatprep.subr.mxu0 0.0
        %1849 = vmatpush1.msra.mxu0 0.0
        %1850 = vmatprep.subr.mxu0 0.0
        %1851 = vmatpush1.msra.mxu0 0.0
        %1852 = vmatprep.subr.mxu0 0.0
        %1853 = vmatpush1.msra.mxu0 0.0
        %1854 = vmatprep.subr.mxu0 0.0
        %1855 = vmatpush1.msra.mxu0 0.0
        %1856 = vmatprep.subr.mxu0 0.0
        %1857 = vmatpush1.msra.mxu0 0.0
        %1858 = vmatprep.subr.mxu0 0.0
        %1859 = vmatpush1.msra.mxu0 0.0
        %1860 = vmatprep.subr.mxu0 0.0
        %1861 = vmatpush1.msra.mxu0 0.0
        %1862 = vmatprep.subr.mxu0 0.0
        %1863 = vmatpush1.msra.mxu0 0.0
        %1864 = vmatprep.subr.mxu0 0.0
        %1865 = vmatpush1.msra.mxu0 0.0
        %1866 = vmatprep.subr.mxu0 0.0
        %1867 = vmatpush1.msra.mxu0 0.0
        %1868 = vmatprep.subr.mxu0 0.0
        %1869 = vmatpush1.msra.mxu0 0.0
        %1870 = vmatprep.subr.mxu0 0.0
        %1871 = vmatpush1.msra.mxu0 0.0
        %1872 = vmatprep.subr.mxu0 0.0
        %1873 = vmatpush1.msra.mxu0 0.0
        %1874 = vmatprep.subr.mxu0 0.0
        %1875 = vmatpush1.msra.mxu0 0.0
        %1876 = vmatprep.subr.mxu0 0.0
        %1877 = vmatpush1.msra.mxu0 0.0
        %1878 = vmatprep.subr.mxu0 0.0
        %1879 = vmatpush1.msra.mxu0 0.0
        %1880 = vmatprep.subr.mxu0 0.0
        %1881 = vmatpush1.msra.mxu0 0.0
        %1882 = vmatprep.subr.mxu0 0.0
        %1883 = vmatpush1.msra.mxu0 0.0
        %1884 = vmatprep.subr.mxu0 0.0
        %1885 = vmatpush1.msra.mxu0 0.0
        %1886 = vmatprep.subr.mxu0 0.0
        %1887 = vmatpush1.msra.mxu0 0.0
        %1888 = vmatprep.subr.mxu0 0.0
        %1889 = vmatpush1.msra.mxu0 0.0
        %1890 = vmatprep.subr.mxu0 0.0
        %1891 = vmatpush1.msra.mxu0 0.0
        %1892 = vmatprep.subr.mxu0 0.0
        %1893 = vmatpush1.msra.mxu0 0.0
        %1894 = vmatprep.subr.mxu0 0.0
        %1895 = vmatpush1.msra.mxu0 0.0
        %1896 = vmatprep.subr.mxu0 0.0
        %1897 = vmatpush1.msra.mxu0 0.0
        %1898 = vmatprep.subr.mxu0 0.0
        %1899 = vmatpush1.msra.mxu0 0.0
        %1900 = vmatprep.mubr.f32.mxu0 0.0
        %v1901 = vand.u32 %v1417, 4294901760
        %1902 = vmatmul.mubr.f32.gmra.mrb[0].mxu0 %v1901
        %v1903 = vpop.f32.mrb[0].mxu0
        %v1904 = vadd.f32 %v1829, %v1903
        %v1905 = vpop.f32.mrb[0].mxu0
        %1906 = vdwg.mxu0
        %v1907 = vmul.f32 %v1904, %v1904
        %v1909 = vrot.slane %v1907, 1
        %v1911 = vadd.f32 %v1907, %v1909
        %v1912 = vmax.f32 %v1911, 1e-24
        %v1913 = vrsqrt.pop %v1912
        %v1914 = vlaneseq
        %v1915 = vshrl.u32 %v1914, 7
        %v1916 = vsub.s32 0, %v1915
        %v1917 = vrot.slane %v1913, %v1916
        %v1918 = vmul.f32 %v1904, %v1917
        %1919 = vst [vmem:[%s134] sm:$0x3] %v1918
        %s1920 = sand.u32 %s71, 1
        %s1921 = scalar_lea.sflag [#allocation3], %s1920
        %s1922 = sand.u32 %s71, 1
        %s1923 = smul.addr %s1922, 2
        %s1924 = scalar_lea.vmem [#allocation2], %s1923
        // Predicated region
        $region29: #{backbone_forward_t.1} parent=27 // pred_check
          %p1925 = pneg %p81
        $region30: #{backbone_forward_t.1} parent=27 // pred_check_branch
          %1927 = sbr.rel (%p1925) target = $region32
        $region31: #{backbone_forward_t.1} parent=27 // pred_region
          %s1929 = ssub.s32 32, 32
          %1930 = vsyncadd %s1921, %s1929
          %s1931 = smul.addr %s16, 32
          %s1932 = scalar_lea.hbm %s2, %s1931
          %s1934 = sshll.u32 %s1924, 4
          %s1935 = int_to_ptr.vmem [resolvable:$true] %s1934
          %1937 = dma.vmem_to_hbm [thread:$0]  %s1935, 32, %s1932, %s1921
        $region32: #{backbone_forward_t.1} parent=27 // pred_fallthru
          _
      $region28: #{backbone_forward_t.1} parent=5 // pred_fallthru
        _
      %p1938 = scmp.le.s32.totalorder 2, %s11
      // Predicated region
      $region33: #{backbone_forward_t.1} parent=5 // pred_check
        %p1939 = pneg %p1938
      $region34: #{backbone_forward_t.1} parent=5 // pred_check_branch
        %1941 = sbr.rel (%p1939) target = $region36
      $region35: #{backbone_forward_t.1} parent=5 // pred_region
        %s1942 = ssub.s32 %s11, 2
        // Predicated region
        $region37: #{backbone_forward_t.1} parent=35 // pred_check
          %p1943 = pneg %p87
        $region38: #{backbone_forward_t.1} parent=35 // pred_check_branch
          %1945 = sbr.rel (%p1943) target = $region40
        $region39: #{backbone_forward_t.1} parent=35 // pred_region
          %s1946 = sand.u32 %s72, 1
          %s1947 = scalar_lea.sflag [#allocation3], %s1946
          %s1948 = sand.u32 %s72, 1
          %s1949 = smul.addr %s1948, 2
          %s1950 = scalar_lea.vmem [#allocation2], %s1949
          %1951 = dma.done %s1947, 32
        $region40: #{backbone_forward_t.1} parent=35 // pred_fallthru
          _
      $region36: #{backbone_forward_t.1} parent=5 // pred_fallthru
        _
    $region6: #{backbone_forward_t.1} parent=1 // loop_footer
      %s15 = sadd.s32 1, %s11
    $region7: #{backbone_forward_t.1} parent=1 // loop_footer_branch
      %10 = sbr.rel target = $region3
    $region8: #{backbone_forward_t.1} parent=1 // loop_exit
      _
    %1952 = vsyncpa [#allocation3], 1
    %s1953 = scalar_lea.sflag [#allocation3], 1
    %1954 = vsyncpa %s1953, 1

</llo_original>
